<compile_context>
chip_gen: v7x
topology: tpu7x:2x2x1
jax: 0.10.0
libtpu: 0.0.40
codegen_flags: <defaults>
</compile_context>

<pallas_src>
import jax
import jax.numpy as jnp
from jax.experimental import pallas as pl
from jax.experimental.pallas import tpu as pltpu


def _round_up(x, m):
    return ((x + m - 1) // m) * m


def bahdanau_attention(query, keys, params, *, block_b=None, block_s=None,
                       compute_dtype=None):
    """Additive (Bahdanau) attention.

    query:  [B, Tq, H]   (only the first query step is used, like the module)
    keys:   [B, S, H]
    params: {"Wa_w":[H,H], "Wa_b":[H], "Ua_w":[H,H], "Ua_b":[H],
             "Va_w":[1,H], "Va_b":[1]}
    Returns (context [B,1,H], weights [B,1,S]).

    compute_dtype=jnp.bfloat16: halve the keys HBM stream + bf16 tanh/Va path
    (use on v6e/v7x; keep the f32 default on v5e or when validating vs f32).
    """
    B, _, H = query.shape
    S = keys.shape[1]
    out_dtype = query.dtype

    key_dtype = (jnp.dtype(compute_dtype) if compute_dtype is not None
                 else jnp.dtype(keys.dtype))
    act_dtype = jnp.bfloat16 if key_dtype == jnp.bfloat16 else jnp.float32
    k_isz = key_dtype.itemsize
    o_isz = jnp.dtype(out_dtype).itemsize

    # ---- VMEM budgeting (includes the f32 intermediates, not just keys) ----
    VMEM_BUDGET = 32 * 1024 * 1024      # target live-set bytes per grid step
    VMEM_LIMIT = 48 * 1024 * 1024       # requested scoped-VMEM limit

    def live_bytes(bb, bs, s_pad):
        keys_tile = 2 * bb * bs * H * k_isz            # keys, double-buffered
        q_tile = 2 * bb * H * k_isz
        f32_tmp = 3 * bb * bs * H * 4                  # ua_k / pre / tanh path
        scratch = bb * s_pad * 4 + bb * H * 4 + 2 * bb * 128 * 4
        outs = 2 * bb * (s_pad + H) * o_isz            # ctx + wts buffers
        wgts = 2 * H * H * k_isz + 4 * H * 4           # Wa, Ua (+ bias, va)
        return keys_tile + q_tile + f32_tmp + scratch + outs + wgts

    # ---- choose the S tile (tile S only when a single block can't fit) ----
    S8 = _round_up(S, 8)
    if block_s is None:
        if live_bytes(8, S8, S8) <= VMEM_BUDGET:
            block_s = S8
        else:
            block_s = 128
            for cand in (8192, 4096, 2048, 1024, 512, 256):
                if cand < S8 and live_bytes(8, cand, _round_up(S, cand)) <= VMEM_BUDGET:
                    block_s = cand
                    break
    else:
        block_s = max(8, _round_up(min(int(block_s), S8), 8))
    S_pad = _round_up(S, block_s)
    num_s = S_pad // block_s

    # ---- choose the batch tile: biggest that fits the budget ---------------
    B8 = _round_up(B, 8)
    if block_b is None:
        bb = 8
        while (bb * 2 <= 1024 and bb * 2 <= B8
               and live_bytes(bb * 2, block_s, S_pad) <= VMEM_BUDGET):
            bb *= 2
        block_b = bb
    else:
        block_b = min(max(8, (int(block_b) // 8) * 8), B8)
    # Megacore (v7x): keep >= 2 batch tiles so the "parallel" axis can shard
    # across both TensorCores (only possible when B8 >= 16).
    if pl.cdiv(B8, block_b) < 2 and B8 >= 16:
        block_b = max(8, ((B8 // 2) // 8) * 8)
    Bp = _round_up(B, block_b)
    num_b = Bp // block_b

    # ---- prepare operands ---------------------------------------------------
    q0 = query[:, 0, :].astype(key_dtype)                      # [B, H]
    keys_c = keys.astype(key_dtype)
    if Bp != B:
        q0 = jnp.pad(q0, ((0, Bp - B), (0, 0)))
        keys_c = jnp.pad(keys_c, ((0, Bp - B), (0, 0), (0, 0)))
    if S_pad != S:
        keys_c = jnp.pad(keys_c, ((0, 0), (0, S_pad - S), (0, 0)))

    wa_t = jnp.asarray(params["Wa_w"]).T.astype(key_dtype)      # [H,H] (in,out)
    ua_t = jnp.asarray(params["Ua_w"]).T.astype(key_dtype)      # [H,H] (in,out)
    bias = (jnp.asarray(params["Wa_b"]) + jnp.asarray(params["Ua_b"])
            ).reshape(1, H).astype(jnp.float32)                 # folded bias
    va = jnp.asarray(params["Va_w"]).reshape(1, H).astype(act_dtype)
    # Va_b dropped on purpose: a constant score shift cancels in softmax.

    mask_s = (S_pad != S)

    # ---- kernel -------------------------------------------------------------
    def kernel(q_ref, k_ref, wa_ref, ua_ref, bias_ref, va_ref,
               ctx_ref, wts_ref,
               m_sc, l_sc, acc_sc, scores_sc):
        s_idx = pl.program_id(1)
        bt, sb, h = k_ref.shape

        @pl.when(s_idx == 0)
        def _init():
            m_sc[...] = jnp.full((bt, 1), -jnp.inf, jnp.float32)
            l_sc[...] = jnp.zeros((bt, 1), jnp.float32)
            acc_sc[...] = jnp.zeros((bt, h), jnp.float32)

        keys_t = k_ref[...]                                      # [Bt, Sb, H]

        # Wa(q): small [Bt,H]x[H,H]; Ua(keys): dominant fused MXU matmul.
        wa_q = jnp.dot(q_ref[...], wa_ref[...],
                       preferred_element_type=jnp.float32)       # [Bt, H] f32
        ua_k = jnp.dot(keys_t.reshape(bt * sb, h), ua_ref[...],
                       preferred_element_type=jnp.float32).reshape(bt, sb, h)

        # tanh(Wa q + Ua k + b) then Va as a VPU multiply + lane reduce.
        pre = wa_q[:, None, :] + ua_k + bias_ref[...]            # f32 [Bt,Sb,H]
        act = jnp.tanh(pre.astype(act_dtype))
        scores = jnp.sum(act * va_ref[...], axis=-1,
                         dtype=jnp.float32)                      # [Bt, Sb] f32

        if mask_s:
            col = s_idx * sb + jax.lax.broadcasted_iota(jnp.int32, (bt, sb), 1)
            scores = jnp.where(col < S, scores, -1e30)

        # Online softmax + context accumulation (exact normalization).
        m_prev = m_sc[...]
        m_new = jnp.maximum(m_prev, jnp.max(scores, axis=-1, keepdims=True))
        alpha = jnp.exp(m_prev - m_new)                          # [Bt, 1]
        e = jnp.exp(scores - m_new)                              # [Bt, Sb]
        l_sc[...] = alpha * l_sc[...] + jnp.sum(e, axis=-1, keepdims=True)
        # Batched matmul (contract S, batch B): no [Bt,Sb,H] f32 temporary.
        ctx_part = jnp.einsum("bqs,bsh->bqh",
                              e[:, None, :].astype(keys_t.dtype), keys_t,
                              preferred_element_type=jnp.float32)[:, 0, :]
        acc_sc[...] = alpha * acc_sc[...] + ctx_part
        m_sc[...] = m_new
        scores_sc[s_idx] = scores        # raw scores -> exact weights at the end

        @pl.when(s_idx == num_s - 1)
        def _finalize():
            inv_l = 1.0 / l_sc[...]                              # exact division
            m_fin = m_sc[...]
            ctx_ref[...] = (acc_sc[...] * inv_l).astype(ctx_ref.dtype)
            for j in range(num_s):                               # static unroll
                w_j = jnp.exp(scores_sc[j] - m_fin) * inv_l
                wts_ref[:, j * sb:(j + 1) * sb] = w_j.astype(wts_ref.dtype)

    # ---- specs --------------------------------------------------------------
    single_buffer_consts = (H * H * k_isz) >= (1 << 20)

    def const_spec(shape):
        # Constant-index operands don't need double-buffering; at large H the
        # duplicate (H,H) copies are pure VMEM waste (matters most on v7x).
        if single_buffer_consts:
            return pl.BlockSpec(shape, lambda b, s: (0, 0),
                                pipeline_mode=pl.Buffered(1))
        return pl.BlockSpec(shape, lambda b, s: (0, 0))

    grid_spec = pltpu.PrefetchScalarGridSpec(
        num_scalar_prefetch=0,
        grid=(num_b, num_s),
        in_specs=[
            pl.BlockSpec((block_b, H), lambda b, s: (b, 0)),          # query
            pl.BlockSpec((block_b, block_s, H), lambda b, s: (b, s, 0)),  # keys
            const_spec((H, H)),                                       # Wa^T
            const_spec((H, H)),                                       # Ua^T
            const_spec((1, H)),                                       # bias
            const_spec((1, H)),                                       # Va row
        ],
        out_specs=[
            pl.BlockSpec((block_b, H), lambda b, s: (b, 0)),          # context
            pl.BlockSpec((block_b, S_pad), lambda b, s: (b, 0)),      # weights
        ],
        scratch_shapes=[
            pltpu.VMEM((block_b, 1), jnp.float32),                    # running max
            pltpu.VMEM((block_b, 1), jnp.float32),                    # running sum
            pltpu.VMEM((block_b, H), jnp.float32),                    # ctx accumulator
            pltpu.VMEM((num_s, block_b, block_s), jnp.float32),       # raw scores
        ],
    )

    ctx, wts = pl.pallas_call(
        kernel,
        out_shape=(jax.ShapeDtypeStruct((Bp, H), out_dtype),
                   jax.ShapeDtypeStruct((Bp, S_pad), out_dtype)),
        grid_spec=grid_spec,
        compiler_params=pltpu.CompilerParams(
            dimension_semantics=("parallel", "arbitrary"),
            vmem_limit_bytes=VMEM_LIMIT),
    )(q0, keys_c, wa_t, ua_t, bias, va)

    context = ctx[:B].reshape(B, 1, H)
    weights = wts[:B, :S].reshape(B, 1, S)
    return context, weights


def _reference(query, keys, params):
    # Pure-JAX replica of the PyTorch forward, for sanity checking.
    B, _, H = query.shape
    S = keys.shape[1]
    q = jnp.broadcast_to(query[:, :1, :], (B, S, H))
    wa_q = q @ params["Wa_w"].T + params["Wa_b"]
    ua_k = keys @ params["Ua_w"].T + params["Ua_b"]
    scores = jnp.tanh(wa_q + ua_k) @ params["Va_w"].T + params["Va_b"]   # [B,S,1]
    scores = jnp.transpose(scores, (0, 2, 1))                            # [B,1,S]
    weights = jax.nn.softmax(scores, axis=-1)
    context = jnp.einsum("bos,bsh->boh", weights, keys)
    return context, weights


def _make_case(seed_key, B, Tq, S, H):
    kq, kk, k0, k1, k2, k3, k4, k5 = jax.random.split(seed_key, 8)
    bound = 1.0 / float(H) ** 0.5
    params = {
        "Wa_w": jax.random.uniform(k0, (H, H), jnp.float32, -bound, bound),
        "Wa_b": jax.random.uniform(k1, (H,), jnp.float32, -bound, bound),
        "Ua_w": jax.random.uniform(k2, (H, H), jnp.float32, -bound, bound),
        "Ua_b": jax.random.uniform(k3, (H,), jnp.float32, -bound, bound),
        "Va_w": jax.random.uniform(k4, (1, H), jnp.float32, -bound, bound),
        "Va_b": jax.random.uniform(k5, (1,), jnp.float32, -bound, bound),
    }
    query = jax.random.normal(kq, (B, Tq, H), jnp.float32)
    keys = jax.random.normal(kk, (B, S, H), jnp.float32)
    return query, keys, params


if __name__ == "__main__":
    root = jax.random.PRNGKey(0)
    key1, key2 = jax.random.split(root, 2)

    # Case 1: small shapes consistent with the module (single S tile path).
    B, Tq, S, H = 2, 3, 8, 32
    query, keys, params = _make_case(key1, B, Tq, S, H)
    ctx, wts = bahdanau_attention(query, keys, params)
    jax.block_until_ready((ctx, wts))
    ctx_r, wts_r = _reference(query, keys, params)
    assert ctx.shape == (B, 1, H) and wts.shape == (B, 1, S)
    assert jnp.allclose(ctx, ctx_r, atol=2e-5, rtol=2e-5)
    assert jnp.allclose(wts, wts_r, atol=2e-5, rtol=2e-5)

    # Case 2: exercise the S-tiled online-softmax path (num_s=2, masked tail).
    B2, Tq2, S2, H2 = 4, 2, 200, 64
    query2, keys2, params2 = _make_case(key2, B2, Tq2, S2, H2)
    ctx2, wts2 = bahdanau_attention(query2, keys2, params2, block_s=128)
    jax.block_until_ready((ctx2, wts2))
    ctx2_r, wts2_r = _reference(query2, keys2, params2)
    assert ctx2.shape == (B2, 1, H2) and wts2.shape == (B2, 1, S2)
    assert jnp.allclose(ctx2, ctx2_r, atol=2e-5, rtol=2e-5)
    assert jnp.allclose(wts2, wts2_r, atol=2e-5, rtol=2e-5)

    print("KERNEL_OK")
</pallas_src>

<mosaic_0001>
module attributes {stable_mosaic.version = 11 : i64} {
  func.func @kernel(%arg0: i32, %arg1: i32, %arg2: memref<8x32xf32, #tpu.memory_space<vmem>>, %arg3: memref<8x8x32xf32, #tpu.memory_space<vmem>>, %arg4: memref<32x32xf32, #tpu.memory_space<vmem>>, %arg5: memref<32x32xf32, #tpu.memory_space<vmem>>, %arg6: memref<1x32xf32, #tpu.memory_space<vmem>>, %arg7: memref<1x32xf32, #tpu.memory_space<vmem>>, %arg8: memref<8x32xf32, #tpu.memory_space<vmem>>, %arg9: memref<8x8xf32, #tpu.memory_space<vmem>>, %arg10: memref<8x1xf32, #tpu.memory_space<vmem>>, %arg11: memref<8x1xf32, #tpu.memory_space<vmem>>, %arg12: memref<8x32xf32, #tpu.memory_space<vmem>>, %arg13: memref<1x8x8xf32, #tpu.memory_space<vmem>>) attributes {dimension_semantics = [#tpu.dimension_semantics<parallel>, #tpu.dimension_semantics<arbitrary>], iteration_bounds = array<i64: 1, 1>, scalar_prefetch = 0 : i64, scratch_operands = 4 : i64, tpu.core_type = #tpu.core_type<tc>, window_params = [{transform_indices = @transform_0, window_bounds = array<i64: 8, 32>}, {transform_indices = @transform_1, window_bounds = array<i64: 8, 8, 32>}, {pipeline_mode = #tpu.pipeline_mode<synchronous>, transform_indices = @transform_2, window_bounds = array<i64: 32, 32>}, {pipeline_mode = #tpu.pipeline_mode<synchronous>, transform_indices = @transform_3, window_bounds = array<i64: 32, 32>}, {pipeline_mode = #tpu.pipeline_mode<synchronous>, transform_indices = @transform_4, window_bounds = array<i64: 1, 32>}, {pipeline_mode = #tpu.pipeline_mode<synchronous>, transform_indices = @transform_5, window_bounds = array<i64: 1, 32>}, {transform_indices = @transform_6, window_bounds = array<i64: 8, 32>}, {transform_indices = @transform_7, window_bounds = array<i64: 8, 8>}]} {
    %c0_i32 = arith.constant 0 : i32
    %0 = arith.cmpi eq, %arg1, %c0_i32 : i32
    %1 = arith.extui %0 : i1 to i32
    %c0_i32_0 = arith.constant 0 : i32
    %2 = arith.cmpi ne, %1, %c0_i32_0 : i32
    scf.if %2 {
      %cst_34 = arith.constant 0xFF800000 : f32
      %55 = vector.broadcast %cst_34 : f32 to vector<8x1xf32>
      %c0_35 = arith.constant 0 : index
      %c0_36 = arith.constant 0 : index
      %56 = vector.load %arg10[%c0_35, %c0_36] : memref<8x1xf32, #tpu.memory_space<vmem>>, vector<8x1xf32>
      tpu.vector_store %arg10[%c0_35, %c0_36], %55 {strides = array<i32>} : memref<8x1xf32, #tpu.memory_space<vmem>>, vector<8x1xf32>,
      %cst_37 = arith.constant 0.000000e+00 : f32
      %57 = vector.broadcast %cst_37 : f32 to vector<8x1xf32>
      %c0_38 = arith.constant 0 : index
      %c0_39 = arith.constant 0 : index
      %58 = vector.load %arg11[%c0_38, %c0_39] : memref<8x1xf32, #tpu.memory_space<vmem>>, vector<8x1xf32>
      tpu.vector_store %arg11[%c0_38, %c0_39], %57 {strides = array<i32>} : memref<8x1xf32, #tpu.memory_space<vmem>>, vector<8x1xf32>,
      %cst_40 = arith.constant 0.000000e+00 : f32
      %59 = vector.broadcast %cst_40 : f32 to vector<8x32xf32>
      %c0_41 = arith.constant 0 : index
      %c0_42 = arith.constant 0 : index
      %60 = vector.load %arg12[%c0_41, %c0_42] : memref<8x32xf32, #tpu.memory_space<vmem>>, vector<8x32xf32>
      tpu.vector_store %arg12[%c0_41, %c0_42], %59 {strides = array<i32>} : memref<8x32xf32, #tpu.memory_space<vmem>>, vector<8x32xf32>,
    } else {
    }
    %c0 = arith.constant 0 : index
    %c0_1 = arith.constant 0 : index
    %c0_2 = arith.constant 0 : index
    %3 = vector.load %arg3[%c0, %c0_1, %c0_2] : memref<8x8x32xf32, #tpu.memory_space<vmem>>, vector<8x8x32xf32>
    %c0_3 = arith.constant 0 : index
    %c0_4 = arith.constant 0 : index
    %4 = vector.load %arg2[%c0_3, %c0_4] : memref<8x32xf32, #tpu.memory_space<vmem>>, vector<8x32xf32>
    %c0_5 = arith.constant 0 : index
    %c0_6 = arith.constant 0 : index
    %5 = vector.load %arg4[%c0_5, %c0_6] : memref<32x32xf32, #tpu.memory_space<vmem>>, vector<32x32xf32>
    %cst = arith.constant dense<0.000000e+00> : vector<8x32xf32>
    %6 = tpu.matmul %4, %5, %cst {dimension_numbers = #tpu.dot_dimension_numbers<[1], [0], [0], [1], [0, 0, 1, 1], [], []>} : vector<8x32xf32>, vector<32x32xf32>, vector<8x32xf32> -> vector<8x32xf32>
    %7 = vector.shape_cast %3 : vector<8x8x32xf32> to vector<64x32xf32>
    %c0_7 = arith.constant 0 : index
    %c0_8 = arith.constant 0 : index
    %8 = vector.load %arg5[%c0_7, %c0_8] : memref<32x32xf32, #tpu.memory_space<vmem>>, vector<32x32xf32>
    %cst_9 = arith.constant dense<0.000000e+00> : vector<64x32xf32>
    %9 = tpu.matmul %7, %8, %cst_9 {dimension_numbers = #tpu.dot_dimension_numbers<[1], [0], [0], [1], [0, 0, 1, 1], [], []>} : vector<64x32xf32>, vector<32x32xf32>, vector<64x32xf32> -> vector<64x32xf32>
    %10 = vector.shape_cast %9 : vector<64x32xf32> to vector<8x8x32xf32>
    %11 = vector.shape_cast %6 : vector<8x32xf32> to vector<8x1x32xf32>
    %12 = vector.broadcast %11 : vector<8x1x32xf32> to vector<8x8x32xf32>
    %13 = arith.addf %12, %10 : vector<8x8x32xf32>
    %c0_10 = arith.constant 0 : index
    %c0_11 = arith.constant 0 : index
    %14 = vector.load %arg6[%c0_10, %c0_11] : memref<1x32xf32, #tpu.memory_space<vmem>>, vector<1x32xf32>
    %15 = vector.shape_cast %14 : vector<1x32xf32> to vector<1x1x32xf32>
    %16 = vector.broadcast %15 : vector<1x1x32xf32> to vector<8x8x32xf32>
    %17 = arith.addf %13, %16 : vector<8x8x32xf32>
    %18 = math.tanh %17 : vector<8x8x32xf32>
    %c0_12 = arith.constant 0 : index
    %c0_13 = arith.constant 0 : index
    %19 = vector.load %arg7[%c0_12, %c0_13] : memref<1x32xf32, #tpu.memory_space<vmem>>, vector<1x32xf32>
    %20 = vector.shape_cast %19 : vector<1x32xf32> to vector<1x1x32xf32>
    %21 = vector.broadcast %20 : vector<1x1x32xf32> to vector<8x8x32xf32>
    %22 = arith.mulf %18, %21 : vector<8x8x32xf32>
    %cst_14 = arith.constant dense<0.000000e+00> : vector<8x8xf32>
    %23 = vector.multi_reduction <add>, %22, %cst_14 [2] : vector<8x8x32xf32> to vector<8x8xf32>
    %c0_15 = arith.constant 0 : index
    %c0_16 = arith.constant 0 : index
    %24 = vector.load %arg10[%c0_15, %c0_16] : memref<8x1xf32, #tpu.memory_space<vmem>>, vector<8x1xf32>
    %cst_17 = arith.constant dense<0xFF800000> : vector<8xf32>
    %25 = vector.multi_reduction <maximumf>, %23, %cst_17 [1] : vector<8x8xf32> to vector<8xf32>
    %26 = vector.shape_cast %25 : vector<8xf32> to vector<8x1xf32>
    %27 = arith.maximumf %24, %26 : vector<8x1xf32>
    %28 = arith.subf %24, %27 : vector<8x1xf32>
    %29 = math.exp %28 : vector<8x1xf32>
    %30 = vector.broadcast %27 : vector<8x1xf32> to vector<8x8xf32>
    %31 = arith.subf %23, %30 : vector<8x8xf32>
    %32 = math.exp %31 : vector<8x8xf32>
    %c0_18 = arith.constant 0 : index
    %c0_19 = arith.constant 0 : index
    %33 = vector.load %arg11[%c0_18, %c0_19] : memref<8x1xf32, #tpu.memory_space<vmem>>, vector<8x1xf32>
    %34 = arith.mulf %29, %33 : vector<8x1xf32>
    %cst_20 = arith.constant dense<0.000000e+00> : vector<8xf32>
    %35 = vector.multi_reduction <add>, %32, %cst_20 [1] : vector<8x8xf32> to vector<8xf32>
    %36 = vector.shape_cast %35 : vector<8xf32> to vector<8x1xf32>
    %37 = arith.addf %34, %36 : vector<8x1xf32>
    %c0_21 = arith.constant 0 : index
    %c0_22 = arith.constant 0 : index
    %38 = vector.load %arg11[%c0_21, %c0_22] : memref<8x1xf32, #tpu.memory_space<vmem>>, vector<8x1xf32>
    tpu.vector_store %arg11[%c0_21, %c0_22], %37 {strides = array<i32>} : memref<8x1xf32, #tpu.memory_space<vmem>>, vector<8x1xf32>,
    %39 = vector.shape_cast %32 : vector<8x8xf32> to vector<8x1x8xf32>
    "tpu.trace_start"() <{level = 10 : i32, message = "bqs,bsh->bqh"}> : () -> ()
    %cst_23 = arith.constant dense<0.000000e+00> : vector<8x1x32xf32>
    %40 = tpu.matmul %39, %3, %cst_23 {dimension_numbers = #tpu.dot_dimension_numbers<[2], [1], [1], [2], [0, 0, 0, 1, 1, 2], [0], [0]>} : vector<8x1x8xf32>, vector<8x8x32xf32>, vector<8x1x32xf32> -> vector<8x1x32xf32>
    "tpu.trace_stop"() : () -> ()
    %41 = vector.shape_cast %40 : vector<8x1x32xf32> to vector<8x32xf32>
    %c0_24 = arith.constant 0 : index
    %c0_25 = arith.constant 0 : index
    %42 = vector.load %arg12[%c0_24, %c0_25] : memref<8x32xf32, #tpu.memory_space<vmem>>, vector<8x32xf32>
    %43 = vector.broadcast %29 : vector<8x1xf32> to vector<8x32xf32>
    %44 = arith.mulf %43, %42 : vector<8x32xf32>
    %45 = arith.addf %44, %41 : vector<8x32xf32>
    %c0_26 = arith.constant 0 : index
    %c0_27 = arith.constant 0 : index
    %46 = vector.load %arg12[%c0_26, %c0_27] : memref<8x32xf32, #tpu.memory_space<vmem>>, vector<8x32xf32>
    tpu.vector_store %arg12[%c0_26, %c0_27], %45 {strides = array<i32>} : memref<8x32xf32, #tpu.memory_space<vmem>>, vector<8x32xf32>,
    %c0_28 = arith.constant 0 : index
    %c0_29 = arith.constant 0 : index
    %47 = vector.load %arg10[%c0_28, %c0_29] : memref<8x1xf32, #tpu.memory_space<vmem>>, vector<8x1xf32>
    tpu.vector_store %arg10[%c0_28, %c0_29], %27 {strides = array<i32>} : memref<8x1xf32, #tpu.memory_space<vmem>>, vector<8x1xf32>,
    %48 = arith.index_cast %arg1 : i32 to index
    %c0_30 = arith.constant 0 : index
    %c0_31 = arith.constant 0 : index
    %49 = vector.load %arg13[%48, %c0_30, %c0_31] : memref<1x8x8xf32, #tpu.memory_space<vmem>>, vector<1x8x8xf32>
    %50 = vector.shape_cast %49 : vector<1x8x8xf32> to vector<8x8xf32>
    %51 = vector.shape_cast %23 : vector<8x8xf32> to vector<1x8x8xf32>
    tpu.vector_store %arg13[%48, %c0_30, %c0_31], %51 {strides = array<i32>} : memref<1x8x8xf32, #tpu.memory_space<vmem>>, vector<1x8x8xf32>,
    %c0_i32_32 = arith.constant 0 : i32
    %52 = arith.cmpi eq, %arg1, %c0_i32_32 : i32
    %53 = arith.extui %52 : i1 to i32
    %c0_i32_33 = arith.constant 0 : i32
    %54 = arith.cmpi ne, %53, %c0_i32_33 : i32
    scf.if %54 {
      %c0_34 = arith.constant 0 : index
      %c0_35 = arith.constant 0 : index
      %55 = vector.load %arg11[%c0_34, %c0_35] : memref<8x1xf32, #tpu.memory_space<vmem>>, vector<8x1xf32>
      %cst_36 = arith.constant 1.000000e+00 : f32
      %56 = vector.broadcast %cst_36 : f32 to vector<8x1xf32>
      %57 = arith.divf %56, %55 : vector<8x1xf32>
      %c0_37 = arith.constant 0 : index
      %c0_38 = arith.constant 0 : index
      %58 = vector.load %arg10[%c0_37, %c0_38] : memref<8x1xf32, #tpu.memory_space<vmem>>, vector<8x1xf32>
      %c0_39 = arith.constant 0 : index
      %c0_40 = arith.constant 0 : index
      %59 = vector.load %arg12[%c0_39, %c0_40] : memref<8x32xf32, #tpu.memory_space<vmem>>, vector<8x32xf32>
      %60 = vector.broadcast %57 : vector<8x1xf32> to vector<8x32xf32>
      %61 = arith.mulf %59, %60 : vector<8x32xf32>
      %c0_41 = arith.constant 0 : index
      %c0_42 = arith.constant 0 : index
      %62 = vector.load %arg8[%c0_41, %c0_42] : memref<8x32xf32, #tpu.memory_space<vmem>>, vector<8x32xf32>
      tpu.vector_store %arg8[%c0_41, %c0_42], %61 {strides = array<i32>} : memref<8x32xf32, #tpu.memory_space<vmem>>, vector<8x32xf32>,
      %c0_43 = arith.constant 0 : index
      %c0_44 = arith.constant 0 : index
      %c0_45 = arith.constant 0 : index
      %63 = vector.load %arg13[%c0_43, %c0_44, %c0_45] : memref<1x8x8xf32, #tpu.memory_space<vmem>>, vector<1x8x8xf32>
      %64 = vector.shape_cast %63 : vector<1x8x8xf32> to vector<8x8xf32>
      %65 = vector.broadcast %58 : vector<8x1xf32> to vector<8x8xf32>
      %66 = arith.subf %64, %65 : vector<8x8xf32>
      %67 = math.exp %66 : vector<8x8xf32>
      %68 = vector.broadcast %57 : vector<8x1xf32> to vector<8x8xf32>
      %69 = arith.mulf %67, %68 : vector<8x8xf32>
      %c0_46 = arith.constant 0 : index
      %c0_47 = arith.constant 0 : index
      %70 = vector.load %arg9[%c0_46, %c0_47] : memref<8x8xf32, #tpu.memory_space<vmem>>, vector<8x8xf32>
      tpu.vector_store %arg9[%c0_46, %c0_47], %69 {strides = array<i32>} : memref<8x8xf32, #tpu.memory_space<vmem>>, vector<8x8xf32>,
    } else {
    }
    return
  }
  func.func @transform_0(%arg0: i32, %arg1: i32) -> (i32, i32) {
    %c0_i32 = arith.constant 0 : i32
    %c0_i32_0 = arith.constant 0 : i32
    return %arg0, %c0_i32 : i32, i32
  }
  func.func @transform_1(%arg0: i32, %arg1: i32) -> (i32, i32, i32) {
    %c0_i32 = arith.constant 0 : i32
    %c0_i32_0 = arith.constant 0 : i32
    return %arg0, %arg1, %c0_i32 : i32, i32, i32
  }
  func.func @transform_2(%arg0: i32, %arg1: i32) -> (i32, i32) {
    %c0_i32 = arith.constant 0 : i32
    %c0_i32_0 = arith.constant 0 : i32
    %c0_i32_1 = arith.constant 0 : i32
    return %c0_i32, %c0_i32_0 : i32, i32
  }
  func.func @transform_3(%arg0: i32, %arg1: i32) -> (i32, i32) {
    %c0_i32 = arith.constant 0 : i32
    %c0_i32_0 = arith.constant 0 : i32
    %c0_i32_1 = arith.constant 0 : i32
    return %c0_i32, %c0_i32_0 : i32, i32
  }
  func.func @transform_4(%arg0: i32, %arg1: i32) -> (i32, i32) {
    %c0_i32 = arith.constant 0 : i32
    %c0_i32_0 = arith.constant 0 : i32
    %c0_i32_1 = arith.constant 0 : i32
    return %c0_i32, %c0_i32_0 : i32, i32
  }
  func.func @transform_5(%arg0: i32, %arg1: i32) -> (i32, i32) {
    %c0_i32 = arith.constant 0 : i32
    %c0_i32_0 = arith.constant 0 : i32
    %c0_i32_1 = arith.constant 0 : i32
    return %c0_i32, %c0_i32_0 : i32, i32
  }
  func.func @transform_6(%arg0: i32, %arg1: i32) -> (i32, i32) {
    %c0_i32 = arith.constant 0 : i32
    %c0_i32_0 = arith.constant 0 : i32
    return %arg0, %c0_i32 : i32, i32
  }
  func.func @transform_7(%arg0: i32, %arg1: i32) -> (i32, i32) {
    %c0_i32 = arith.constant 0 : i32
    %c0_i32_0 = arith.constant 0 : i32
    return %arg0, %c0_i32 : i32, i32
  }
}

</mosaic_0001>

<llo_original>
// kernel: tpu_custom_call.1
$region0: #{tpu_custom_call.1}
  #allocation0 [shape = 'u32[]', space=smem, size = 0x4, offset = 0x4, fixed_abs, tag = 'smem constant byte address 0x4 - core index']
  #allocation1 [shape = 'u32[144,128]{1,0:T(1,128)}', space=vmem, size = 0x12000, scoped, tag = 'internal scratch']
  #allocation2 [shape = 'f32[8,1]{1,0:T(8,128)}', space=vmem, size = 0x1000, scoped, tag = 'scratch operand']
  #allocation3 [shape = 'f32[8,1]{1,0:T(8,128)}', space=vmem, size = 0x1000, scoped, tag = 'scratch operand']
  #allocation4 [shape = 'f32[8,32]{1,0:T(8,128)}', space=vmem, size = 0x1000, scoped, tag = 'scratch operand']
  #allocation5 [shape = 'f32[1,8,8]{2,1,0:T(8,128)}', space=vmem, size = 0x1000, scoped, tag = 'scratch operand']
  %s0 = inlined_call_operand.hbm [shape: f32[8,32], index: 0, kind: input, shape index: {}]
  %s1 = inlined_call_operand.hbm [shape: f32[8,8,32], index: 1, kind: input, shape index: {}]
  %s2 = inlined_call_operand.hbm [shape: f32[32,32], index: 2, kind: input, shape index: {}]
  %s3 = inlined_call_operand.hbm [shape: f32[32,32], index: 3, kind: input, shape index: {}]
  %s4 = inlined_call_operand.vmem [shape: f32[1,32], index: 4, kind: input, shape index: {}]
  %s5 = inlined_call_operand.vmem [shape: f32[1,32], index: 5, kind: input, shape index: {}]
  %s6 = inlined_call_operand.hbm [shape: f32[8,32], index: 6, kind: output, shape index: {0}]
  %s7 = inlined_call_operand.hbm [shape: f32[8,8], index: 7, kind: output, shape index: {1}]
  %8 = xla_tuple %s6, %s7
  %s9 = sld [smem:[#allocation0]]
  $region66: #{tpu_custom_call.1} parent=0
    _
  %s11 = ssub.s32 1, %s9
  %s12 = scalar_select 0, %s11, %s9
  $region1: #{tpu_custom_call.1} parent=0
    #allocation6 [shape = 'u8[4096]{0}', space=vmem, size = 0x1000, scoped, tag = 'input window, operand 0, single buffered']
    #allocation7 [shape = 's32[1]{0}', space=sflag, size = 0x4, scoped, tag = 'scoped memory for tpu_custom_call.1']
    #allocation8 [shape = 's32[1]{0}', space=sflag, size = 0x4, scoped, tag = 'scoped memory for tpu_custom_call.1']
    #allocation9 [shape = 'u8[32768]{0}', space=vmem, size = 0x8000, scoped, tag = 'input window, operand 1, single buffered']
    #allocation10 [shape = 's32[1]{0}', space=sflag, size = 0x4, scoped, tag = 'scoped memory for tpu_custom_call.1']
    #allocation11 [shape = 'u8[16384]{0}', space=vmem, size = 0x4000, scoped, tag = 'input window, operand 2, single buffered']
    #allocation12 [shape = 'u8[16384]{0}', space=vmem, size = 0x4000, scoped, tag = 'input window, operand 3, single buffered']
    #allocation13 [shape = 's32[1]{0}', space=sflag, size = 0x4, scoped, tag = 'scoped memory for tpu_custom_call.1']
    #allocation14 [shape = 'u8[4096]{0}', space=vmem, size = 0x1000, scoped, tag = 'output window, operand 0, single buffered']
    #allocation15 [shape = 'u8[4096]{0}', space=vmem, size = 0x1000, scoped, tag = 'output window, operand 1, single buffered']
    #allocation16 [shape = 's32[1]{0}', space=sflag, size = 0x4, scoped, tag = 'scoped memory for tpu_custom_call.1']
    %13 = vsyncpa [#allocation7], 0
    %14 = vsyncpa [#allocation10], 0
    %15 = vsyncpa [#allocation13], 0
    %16 = vsyncpa [#allocation8], 0
    %17 = vsyncpa [#allocation16], 0
    // Predicated region
    $region2: #{tpu_custom_call.1} parent=1 // pred_check
      _
    $region3: #{tpu_custom_call.1} parent=1 // pred_check_branch
      %19 = sbr.rel (0) target = $region5
    $region4: #{tpu_custom_call.1} parent=1 // pred_region
      %s21 = ssub.s32 128, 128
      %22 = vsyncadd [#allocation7], %s21
      %s24 = sshll.u32 [#allocation6], 4
      %s25 = int_to_ptr.vmem [resolvable:$true] %s24
      %27 = dma.hbm_to_vmem [thread:$0]  %s0, 128, %s25, [#allocation7]
    $region5: #{tpu_custom_call.1} parent=1 // pred_fallthru
      _
    // Predicated region
    $region6: #{tpu_custom_call.1} parent=1 // pred_check
      _
    $region7: #{tpu_custom_call.1} parent=1 // pred_check_branch
      %29 = sbr.rel (0) target = $region9
    $region8: #{tpu_custom_call.1} parent=1 // pred_region
      %s31 = ssub.s32 1024, 1024
      %32 = vsyncadd [#allocation10], %s31
      %s33 = sshll.u32 [#allocation9], 4
      %s34 = int_to_ptr.vmem [resolvable:$true] %s33
      %39 = dma.hbm_to_vmem [thread:$0]  %s1, 1024, %s34, [#allocation10], 128, 128, 8
    $region9: #{tpu_custom_call.1} parent=1 // pred_fallthru
      _
    // Predicated region
    $region10: #{tpu_custom_call.1} parent=1 // pred_check
      _
    $region11: #{tpu_custom_call.1} parent=1 // pred_check_branch
      %41 = sbr.rel (0) target = $region13
    $region12: #{tpu_custom_call.1} parent=1 // pred_region
      %s43 = ssub.s32 512, 512
      %44 = vsyncadd [#allocation10], %s43
      %s45 = sshll.u32 [#allocation11], 4
      %s46 = int_to_ptr.vmem [resolvable:$true] %s45
      %51 = dma.hbm_to_vmem [thread:$0]  %s2, 512, %s46, [#allocation10], 128, 128, 8
    $region13: #{tpu_custom_call.1} parent=1 // pred_fallthru
      _
    // Predicated region
    $region14: #{tpu_custom_call.1} parent=1 // pred_check
      _
    $region15: #{tpu_custom_call.1} parent=1 // pred_check_branch
      %53 = sbr.rel (0) target = $region17
    $region16: #{tpu_custom_call.1} parent=1 // pred_region
      %s55 = ssub.s32 512, 512
      %56 = vsyncadd [#allocation13], %s55
      %s57 = sshll.u32 [#allocation12], 4
      %s58 = int_to_ptr.vmem [resolvable:$true] %s57
      %63 = dma.hbm_to_vmem [thread:$0]  %s3, 512, %s58, [#allocation13], 128, 128, 8
    $region17: #{tpu_custom_call.1} parent=1 // pred_fallthru
      _
    // Predicated region
    $region18: #{tpu_custom_call.1} parent=1 // pred_check
      _
    $region19: #{tpu_custom_call.1} parent=1 // pred_check_branch
      %65 = sbr.rel (0) target = $region21
    $region20: #{tpu_custom_call.1} parent=1 // pred_region
      _
    $region21: #{tpu_custom_call.1} parent=1 // pred_fallthru
      _
    // Predicated region
    $region22: #{tpu_custom_call.1} parent=1 // pred_check
      _
    $region23: #{tpu_custom_call.1} parent=1 // pred_check_branch
      %67 = sbr.rel (0) target = $region25
    $region24: #{tpu_custom_call.1} parent=1 // pred_region
      _
    $region25: #{tpu_custom_call.1} parent=1 // pred_fallthru
      _
    // Predicated region
    $region26: #{tpu_custom_call.1} parent=1 // pred_check
      _
    $region27: #{tpu_custom_call.1} parent=1 // pred_check_branch
      %69 = sbr.rel (0) target = $region29
    $region28: #{tpu_custom_call.1} parent=1 // pred_region
      %70 = dma.done [#allocation7], 128
    $region29: #{tpu_custom_call.1} parent=1 // pred_fallthru
      _
    // Predicated region
    $region30: #{tpu_custom_call.1} parent=1 // pred_check
      _
    $region31: #{tpu_custom_call.1} parent=1 // pred_check_branch
      %72 = sbr.rel (0) target = $region33
    $region32: #{tpu_custom_call.1} parent=1 // pred_region
      %73 = dma.done [#allocation10], 1024
    $region33: #{tpu_custom_call.1} parent=1 // pred_fallthru
      _
    // Predicated region
    $region34: #{tpu_custom_call.1} parent=1 // pred_check
      _
    $region35: #{tpu_custom_call.1} parent=1 // pred_check_branch
      %75 = sbr.rel (0) target = $region37
    $region36: #{tpu_custom_call.1} parent=1 // pred_region
      %76 = dma.done [#allocation10], 512
    $region37: #{tpu_custom_call.1} parent=1 // pred_fallthru
      _
    // Predicated region
    $region38: #{tpu_custom_call.1} parent=1 // pred_check
      _
    $region39: #{tpu_custom_call.1} parent=1 // pred_check_branch
      %78 = sbr.rel (0) target = $region41
    $region40: #{tpu_custom_call.1} parent=1 // pred_region
      %79 = dma.done [#allocation13], 512
    $region41: #{tpu_custom_call.1} parent=1 // pred_fallthru
      _
    %p80 = scmp.eq.s32.totalorder 0, 0
    // Predicated region
    $region42: #{tpu_custom_call.1} parent=1 // pred_check
      %p81 = pneg %p80
    $region43: #{tpu_custom_call.1} parent=1 // pred_check_branch
      %83 = sbr.rel (%p81) target = $region45
    $region44: #{tpu_custom_call.1} parent=1 // pred_region
      %vm84 = vcmask 7168
      %85 = vst.msk [vmem:[#allocation2] sm:$0xff] %vm84, -inf
      %86 = vst.msk [vmem:[#allocation3] sm:$0xff] %vm84, 0.0
      %vm87 = vcmask 261120
      %88 = vst.msk [vmem:[#allocation4] sm:$0xff] %vm87, 0.0
    $region45: #{tpu_custom_call.1} parent=1 // pred_fallthru
      _
    %v89 = vld [vmem:[#allocation9] sm:$0xff]
    %v90 = vld [vmem:[#allocation9 + $0x8] sm:$0xff]
    %v91 = vld [vmem:[#allocation9 + $0x10] sm:$0xff]
    %v92 = vld [vmem:[#allocation9 + $0x18] sm:$0xff]
    %v93 = vld [vmem:[#allocation9 + $0x20] sm:$0xff]
    %v94 = vld [vmem:[#allocation9 + $0x28] sm:$0xff]
    %v95 = vld [vmem:[#allocation9 + $0x30] sm:$0xff]
    %v96 = vld [vmem:[#allocation9 + $0x38] sm:$0xff]
    %v97 = vld [vmem:[#allocation6] sm:$0xff]
    %v98 = vld [vmem:[#allocation11] sm:$0xff]
    %v99 = vld [vmem:[#allocation11 + $0x8] sm:$0xff]
    %v100 = vld [vmem:[#allocation11 + $0x10] sm:$0xff]
    %v101 = vld [vmem:[#allocation11 + $0x18] sm:$0xff]
    %vm102 = vcmask 261120
    %v104 = vsel %vm102, %v97, 0
    %106 = vmatprep.subr.mxu0 0.0
    %107 = vmatpush1.msra.mxu0 %v98
    %108 = vmatprep.subr.mxu0 0.0
    %109 = vmatpush1.msra.mxu0 %v99
    %110 = vmatprep.subr.mxu0 0.0
    %111 = vmatpush1.msra.mxu0 %v100
    %112 = vmatprep.subr.mxu0 0.0
    %113 = vmatpush1.msra.mxu0 %v101
    %114 = vmatprep.subr.mxu0 0.0
    %115 = vmatpush1.msra.mxu0 0.0
    %116 = vmatprep.subr.mxu0 0.0
    %117 = vmatpush1.msra.mxu0 0.0
    %118 = vmatprep.subr.mxu0 0.0
    %119 = vmatpush1.msra.mxu0 0.0
    %120 = vmatprep.subr.mxu0 0.0
    %121 = vmatpush1.msra.mxu0 0.0
    %122 = vmatprep.subr.mxu0 0.0
    %123 = vmatpush1.msra.mxu0 0.0
    %124 = vmatprep.subr.mxu0 0.0
    %125 = vmatpush1.msra.mxu0 0.0
    %126 = vmatprep.subr.mxu0 0.0
    %127 = vmatpush1.msra.mxu0 0.0
    %128 = vmatprep.subr.mxu0 0.0
    %129 = vmatpush1.msra.mxu0 0.0
    %130 = vmatprep.subr.mxu0 0.0
    %131 = vmatpush1.msra.mxu0 0.0
    %132 = vmatprep.subr.mxu0 0.0
    %133 = vmatpush1.msra.mxu0 0.0
    %134 = vmatprep.subr.mxu0 0.0
    %135 = vmatpush1.msra.mxu0 0.0
    %136 = vmatprep.subr.mxu0 0.0
    %137 = vmatpush1.msra.mxu0 0.0
    %138 = vmatprep.subr.mxu0 0.0
    %139 = vmatpush1.msra.mxu0 0.0
    %140 = vmatprep.subr.mxu0 0.0
    %141 = vmatpush1.msra.mxu0 0.0
    %142 = vmatprep.subr.mxu0 0.0
    %143 = vmatpush1.msra.mxu0 0.0
    %144 = vmatprep.subr.mxu0 0.0
    %145 = vmatpush1.msra.mxu0 0.0
    %146 = vmatprep.subr.mxu0 0.0
    %147 = vmatpush1.msra.mxu0 0.0
    %148 = vmatprep.subr.mxu0 0.0
    %149 = vmatpush1.msra.mxu0 0.0
    %150 = vmatprep.subr.mxu0 0.0
    %151 = vmatpush1.msra.mxu0 0.0
    %152 = vmatprep.subr.mxu0 0.0
    %153 = vmatpush1.msra.mxu0 0.0
    %154 = vmatprep.subr.mxu0 0.0
    %155 = vmatpush1.msra.mxu0 0.0
    %156 = vmatprep.subr.mxu0 0.0
    %157 = vmatpush1.msra.mxu0 0.0
    %158 = vmatprep.subr.mxu0 0.0
    %159 = vmatpush1.msra.mxu0 0.0
    %160 = vmatprep.subr.mxu0 0.0
    %161 = vmatpush1.msra.mxu0 0.0
    %162 = vmatprep.subr.mxu0 0.0
    %163 = vmatpush1.msra.mxu0 0.0
    %164 = vmatprep.subr.mxu0 0.0
    %165 = vmatpush1.msra.mxu0 0.0
    %166 = vmatprep.subr.mxu0 0.0
    %167 = vmatpush1.msra.mxu0 0.0
    %168 = vmatprep.subr.mxu0 0.0
    %169 = vmatpush1.msra.mxu0 0.0
    %170 = vmatprep.mubr.f32.mxu0 0.0
    %171 = vmatmul.mubr.f32.gmra.mrb[0].mxu0 %v104
    %v172 = vpop.f32.mrb[0].mxu0
    %v173 = vadd.f32 0.0, %v172
    %v174 = vpop.f32.mrb[0].mxu0
    %175 = vdwg.mxu0
    %v176 = vld [vmem:[#allocation12] sm:$0xff]
    %v177 = vld [vmem:[#allocation12 + $0x8] sm:$0xff]
    %v178 = vld [vmem:[#allocation12 + $0x10] sm:$0xff]
    %v179 = vld [vmem:[#allocation12 + $0x18] sm:$0xff]
    %v181 = vsel %vm102, %v89, 0
    %v184 = vsel %vm102, %v90, 0
    %v187 = vsel %vm102, %v91, 0
    %v190 = vsel %vm102, %v92, 0
    %v193 = vsel %vm102, %v93, 0
    %v196 = vsel %vm102, %v94, 0
    %v199 = vsel %vm102, %v95, 0
    %v202 = vsel %vm102, %v96, 0
    %204 = vmatprep.subr.mxu0 0.0
    %205 = vmatpush1.msra.mxu0 %v176
    %206 = vmatprep.subr.mxu0 0.0
    %207 = vmatpush1.msra.mxu0 %v177
    %208 = vmatprep.subr.mxu0 0.0
    %209 = vmatpush1.msra.mxu0 %v178
    %210 = vmatprep.subr.mxu0 0.0
    %211 = vmatpush1.msra.mxu0 %v179
    %212 = vmatprep.subr.mxu0 0.0
    %213 = vmatpush1.msra.mxu0 0.0
    %214 = vmatprep.subr.mxu0 0.0
    %215 = vmatpush1.msra.mxu0 0.0
    %216 = vmatprep.subr.mxu0 0.0
    %217 = vmatpush1.msra.mxu0 0.0
    %218 = vmatprep.subr.mxu0 0.0
    %219 = vmatpush1.msra.mxu0 0.0
    %220 = vmatprep.subr.mxu0 0.0
    %221 = vmatpush1.msra.mxu0 0.0
    %222 = vmatprep.subr.mxu0 0.0
    %223 = vmatpush1.msra.mxu0 0.0
    %224 = vmatprep.subr.mxu0 0.0
    %225 = vmatpush1.msra.mxu0 0.0
    %226 = vmatprep.subr.mxu0 0.0
    %227 = vmatpush1.msra.mxu0 0.0
    %228 = vmatprep.subr.mxu0 0.0
    %229 = vmatpush1.msra.mxu0 0.0
    %230 = vmatprep.subr.mxu0 0.0
    %231 = vmatpush1.msra.mxu0 0.0
    %232 = vmatprep.subr.mxu0 0.0
    %233 = vmatpush1.msra.mxu0 0.0
    %234 = vmatprep.subr.mxu0 0.0
    %235 = vmatpush1.msra.mxu0 0.0
    %236 = vmatprep.subr.mxu0 0.0
    %237 = vmatpush1.msra.mxu0 0.0
    %238 = vmatprep.subr.mxu0 0.0
    %239 = vmatpush1.msra.mxu0 0.0
    %240 = vmatprep.subr.mxu0 0.0
    %241 = vmatpush1.msra.mxu0 0.0
    %242 = vmatprep.subr.mxu0 0.0
    %243 = vmatpush1.msra.mxu0 0.0
    %244 = vmatprep.subr.mxu0 0.0
    %245 = vmatpush1.msra.mxu0 0.0
    %246 = vmatprep.subr.mxu0 0.0
    %247 = vmatpush1.msra.mxu0 0.0
    %248 = vmatprep.subr.mxu0 0.0
    %249 = vmatpush1.msra.mxu0 0.0
    %250 = vmatprep.subr.mxu0 0.0
    %251 = vmatpush1.msra.mxu0 0.0
    %252 = vmatprep.subr.mxu0 0.0
    %253 = vmatpush1.msra.mxu0 0.0
    %254 = vmatprep.subr.mxu0 0.0
    %255 = vmatpush1.msra.mxu0 0.0
    %256 = vmatprep.subr.mxu0 0.0
    %257 = vmatpush1.msra.mxu0 0.0
    %258 = vmatprep.subr.mxu0 0.0
    %259 = vmatpush1.msra.mxu0 0.0
    %260 = vmatprep.subr.mxu0 0.0
    %261 = vmatpush1.msra.mxu0 0.0
    %262 = vmatprep.subr.mxu0 0.0
    %263 = vmatpush1.msra.mxu0 0.0
    %264 = vmatprep.subr.mxu0 0.0
    %265 = vmatpush1.msra.mxu0 0.0
    %266 = vmatprep.subr.mxu0 0.0
    %267 = vmatpush1.msra.mxu0 0.0
    %268 = vmatprep.mubr.f32.mxu0 0.0
    %269 = vmatmul.mubr.f32.gmra.mrb[0].mxu0 %v181
    %v270 = vpop.f32.mrb[0].mxu0
    %v271 = vadd.f32 0.0, %v270
    %v272 = vpop.f32.mrb[0].mxu0
    %273 = vmatprep.mubr.f32.mxu0 0.0
    %274 = vmatmul.mubr.f32.gmra.mrb[0].mxu0 %v184
    %v275 = vpop.f32.mrb[0].mxu0
    %v276 = vadd.f32 0.0, %v275
    %v277 = vpop.f32.mrb[0].mxu0
    %278 = vmatprep.mubr.f32.mxu0 0.0
    %279 = vmatmul.mubr.f32.gmra.mrb[0].mxu0 %v187
    %v280 = vpop.f32.mrb[0].mxu0
    %v281 = vadd.f32 0.0, %v280
    %v282 = vpop.f32.mrb[0].mxu0
    %283 = vmatprep.mubr.f32.mxu0 0.0
    %284 = vmatmul.mubr.f32.gmra.mrb[0].mxu0 %v190
    %v285 = vpop.f32.mrb[0].mxu0
    %v286 = vadd.f32 0.0, %v285
    %v287 = vpop.f32.mrb[0].mxu0
    %288 = vmatprep.mubr.f32.mxu0 0.0
    %289 = vmatmul.mubr.f32.gmra.mrb[0].mxu0 %v193
    %v290 = vpop.f32.mrb[0].mxu0
    %v291 = vadd.f32 0.0, %v290
    %v292 = vpop.f32.mrb[0].mxu0
    %293 = vmatprep.mubr.f32.mxu0 0.0
    %294 = vmatmul.mubr.f32.gmra.mrb[0].mxu0 %v196
    %v295 = vpop.f32.mrb[0].mxu0
    %v296 = vadd.f32 0.0, %v295
    %v297 = vpop.f32.mrb[0].mxu0
    %298 = vmatprep.mubr.f32.mxu0 0.0
    %299 = vmatmul.mubr.f32.gmra.mrb[0].mxu0 %v199
    %v300 = vpop.f32.mrb[0].mxu0
    %v301 = vadd.f32 0.0, %v300
    %v302 = vpop.f32.mrb[0].mxu0
    %303 = vmatprep.mubr.f32.mxu0 0.0
    %304 = vmatmul.mubr.f32.gmra.mrb[0].mxu0 %v202
    %v305 = vpop.f32.mrb[0].mxu0
    %v306 = vadd.f32 0.0, %v305
    %v307 = vpop.f32.mrb[0].mxu0
    %308 = vdwg.mxu0
    %v310 = vcombine.high %v173, %v173
    %v312 = vunpack.c.l.s4 1966171168
    %v313 = vunpack.c.0.s8 %v312
    %v314 = vlaneseq
    %v315 = vshrl.u32 %v314, 7
    %v316 = vsub.s32 %v313, %v315
    %v317 = vrot.slane %v173, %v316
    %v319 = vunpack.c.l.s4 1966171168
    %v320 = vunpack.c.0.s8 %v319
    %v321 = vlaneseq
    %v322 = vshrl.u32 %v321, 7
    %v323 = vsub.s32 %v320, %v322
    %v324 = vrot.slane %v310, %v323
    %v325 = vcombine.high %v317, %v317
    %v326 = vcombine.high %v324, %v324
    %v328 = vunpack.c.l.s4 1966171168
    %v329 = vunpack.c.0.s8 %v328
    %v330 = vlaneseq
    %v331 = vshrl.u32 %v330, 7
    %v332 = vsub.s32 %v329, %v331
    %v333 = vrot.slane %v317, %v332
    %v335 = vunpack.c.l.s4 1966171168
    %v336 = vunpack.c.0.s8 %v335
    %v337 = vlaneseq
    %v338 = vshrl.u32 %v337, 7
    %v339 = vsub.s32 %v336, %v338
    %v340 = vrot.slane %v324, %v339
    %v342 = vunpack.c.l.s4 1966171168
    %v343 = vunpack.c.0.s8 %v342
    %v344 = vlaneseq
    %v345 = vshrl.u32 %v344, 7
    %v346 = vsub.s32 %v343, %v345
    %v347 = vrot.slane %v325, %v346
    %v349 = vunpack.c.l.s4 1966171168
    %v350 = vunpack.c.0.s8 %v349
    %v351 = vlaneseq
    %v352 = vshrl.u32 %v351, 7
    %v353 = vsub.s32 %v350, %v352
    %v354 = vrot.slane %v326, %v353
    %v355 = vcombine.high %v333, %v333
    %v356 = vcombine.high %v340, %v340
    %v357 = vcombine.high %v347, %v347
    %v358 = vcombine.high %v354, %v354
    %v359 = vlaneseq
    %v360 = vshrl.u32 %v359, 7
    %v361 = vsub.s32 0, %v360
    %v362 = vrot.slane %v333, %v361
    %v363 = vlaneseq
    %v364 = vshrl.u32 %v363, 7
    %v365 = vsub.s32 0, %v364
    %v366 = vrot.slane %v347, %v365
    %v367 = vlaneseq
    %v368 = vshrl.u32 %v367, 7
    %v369 = vsub.s32 0, %v368
    %v370 = vrot.slane %v355, %v369
    %v371 = vlaneseq
    %v372 = vshrl.u32 %v371, 7
    %v373 = vsub.s32 0, %v372
    %v374 = vrot.slane %v357, %v373
    %v375 = vlaneseq
    %v376 = vshrl.u32 %v375, 7
    %v377 = vsub.s32 0, %v376
    %v378 = vrot.slane %v340, %v377
    %v379 = vlaneseq
    %v380 = vshrl.u32 %v379, 7
    %v381 = vsub.s32 0, %v380
    %v382 = vrot.slane %v354, %v381
    %v383 = vlaneseq
    %v384 = vshrl.u32 %v383, 7
    %v385 = vsub.s32 0, %v384
    %v386 = vrot.slane %v356, %v385
    %v387 = vlaneseq
    %v388 = vshrl.u32 %v387, 7
    %v389 = vsub.s32 0, %v388
    %v390 = vrot.slane %v358, %v389
    %v399 = vadd.f32 %v362, %v271
    %v400 = vadd.f32 %v366, %v276
    %v401 = vadd.f32 %v370, %v281
    %v402 = vadd.f32 %v374, %v286
    %v403 = vadd.f32 %v378, %v291
    %v404 = vadd.f32 %v382, %v296
    %v405 = vadd.f32 %v386, %v301
    %v406 = vadd.f32 %v390, %v306
    %v407 = vld [vmem:[%s4] sm:$0x1]
    %v409 = vlaneseq
    %v410 = vshrl.u32 %v409, 7
    %v411 = vsub.s32 0, %v410
    %v412 = vrot.slane %v407, %v411
    %v414 = vadd.f32 %v399, %v412
    %v415 = vadd.f32 %v400, %v412
    %v416 = vadd.f32 %v401, %v412
    %v417 = vadd.f32 %v402, %v412
    %v418 = vadd.f32 %v403, %v412
    %v419 = vadd.f32 %v404, %v412
    %v420 = vadd.f32 %v405, %v412
    %v421 = vadd.f32 %v406, %v412
    %v422 = vtanh.pop %v414
    %v423 = vtanh.pop %v415
    %v424 = vtanh.pop %v416
    %v425 = vtanh.pop %v417
    %v426 = vtanh.pop %v418
    %v427 = vtanh.pop %v419
    %v428 = vtanh.pop %v420
    %v429 = vtanh.pop %v421
    %v430 = vld [vmem:[%s5] sm:$0x1]
    %v432 = vlaneseq
    %v433 = vshrl.u32 %v432, 7
    %v434 = vsub.s32 0, %v433
    %v435 = vrot.slane %v430, %v434
    %v437 = vmul.f32 %v422, %v435
    %v438 = vmul.f32 %v423, %v435
    %v439 = vmul.f32 %v424, %v435
    %v440 = vmul.f32 %v425, %v435
    %v441 = vmul.f32 %v426, %v435
    %v442 = vmul.f32 %v427, %v435
    %v443 = vmul.f32 %v428, %v435
    %v444 = vmul.f32 %v429, %v435
    %v445 = vsel %vm102, %v437, 0.0
    %446 = vadd.xlane.f32.xlu0 %v445
    %v447 = vpop.xlane.xlu0 %446
    %v448 = vsel %vm102, %v438, 0.0
    %449 = vadd.xlane.f32.xlu0 %v448
    %v450 = vpop.xlane.xlu0 %449
    %v451 = vsel %vm102, %v439, 0.0
    %452 = vadd.xlane.f32.xlu0 %v451
    %v453 = vpop.xlane.xlu0 %452
    %v454 = vsel %vm102, %v440, 0.0
    %455 = vadd.xlane.f32.xlu0 %v454
    %v456 = vpop.xlane.xlu0 %455
    %v457 = vsel %vm102, %v441, 0.0
    %458 = vadd.xlane.f32.xlu0 %v457
    %v459 = vpop.xlane.xlu0 %458
    %v460 = vsel %vm102, %v442, 0.0
    %461 = vadd.xlane.f32.xlu0 %v460
    %v462 = vpop.xlane.xlu0 %461
    %v463 = vsel %vm102, %v443, 0.0
    %464 = vadd.xlane.f32.xlu0 %v463
    %v465 = vpop.xlane.xlu0 %464
    %v466 = vsel %vm102, %v444, 0.0
    %467 = vadd.xlane.f32.xlu0 %v466
    %v468 = vpop.xlane.xlu0 %467
    %v469 = vld [vmem:[#allocation2] sm:$0xff]
    %v478 = vlaneseq
    %v479 = vand.u32 %v478, 127
    %v480 = vlaneseq
    %v481 = vshrl.u32 %v480, 7
    %v482 = vsub.s32 %v479, %v481
    %v483 = vrot.slane %v447, %v482
    %v484 = vlaneseq
    %v485 = vshrl.u32 %v484, 7
    %v486 = vsub.s32 %v479, %v485
    %v487 = vrot.slane %v450, %v486
    %v488 = vlaneseq
    %v489 = vshrl.u32 %v488, 7
    %v490 = vsub.s32 %v479, %v489
    %v491 = vrot.slane %v453, %v490
    %v492 = vlaneseq
    %v493 = vshrl.u32 %v492, 7
    %v494 = vsub.s32 %v479, %v493
    %v495 = vrot.slane %v456, %v494
    %v496 = vlaneseq
    %v497 = vshrl.u32 %v496, 7
    %v498 = vsub.s32 %v479, %v497
    %v499 = vrot.slane %v459, %v498
    %v500 = vlaneseq
    %v501 = vshrl.u32 %v500, 7
    %v502 = vsub.s32 %v479, %v501
    %v503 = vrot.slane %v462, %v502
    %v504 = vlaneseq
    %v505 = vshrl.u32 %v504, 7
    %v506 = vsub.s32 %v479, %v505
    %v507 = vrot.slane %v465, %v506
    %v508 = vlaneseq
    %v509 = vshrl.u32 %v508, 7
    %v510 = vsub.s32 %v479, %v509
    %v511 = vrot.slane %v468, %v510
    %vm512 = vcmask 1041409
    %v513 = vsel %vm512, %v487, %v483
    %vm514 = vcmask 1042434
    %v515 = vsel %vm514, %v491, %v513
    %vm516 = vcmask 1043459
    %v517 = vsel %vm516, %v495, %v515
    %vm518 = vcmask 1044484
    %v519 = vsel %vm518, %v499, %v517
    %vm520 = vcmask 1045509
    %v521 = vsel %vm520, %v503, %v519
    %vm522 = vcmask 1046534
    %v523 = vsel %vm522, %v507, %v521
    %vm524 = vcmask 1047559
    %v525 = vsel %vm524, %v511, %v523
    %vm527 = vcmask 64512
    %v528 = vsel %vm527, %v525, -inf
    %529 = vmax.xlane.f32.xlu0 %v528
    %v530 = vpop.xlane.xlu0 %529
    %v531 = vmax.f32 %v469, %v530
    %v532 = vsub.f32 %v469, %v531
    %v533 = vmul.f32 %v532, 1.442695
    %v534 = vpow.pop %v533
    %536 = vset.pattern.permute.xlu0 0
    %537 = vperm.xlu0 %536, %v531
    %v538 = vpop.permute.xlu0 %537
    %v539 = vlaneseq
    %v540 = vshrl.u32 %v539, 7
    %v541 = vsub.s32 0, %v540
    %v542 = vrot.slane %v538, %v541
    %v543 = vlaneseq
    %v544 = vshrl.u32 %v543, 7
    %v545 = vsub.s32 1, %v544
    %v546 = vrot.slane %v538, %v545
    %v547 = vlaneseq
    %v548 = vshrl.u32 %v547, 7
    %v549 = vsub.s32 2, %v548
    %v550 = vrot.slane %v538, %v549
    %v551 = vlaneseq
    %v552 = vshrl.u32 %v551, 7
    %v553 = vsub.s32 3, %v552
    %v554 = vrot.slane %v538, %v553
    %v555 = vlaneseq
    %v556 = vshrl.u32 %v555, 7
    %v557 = vsub.s32 4, %v556
    %v558 = vrot.slane %v538, %v557
    %v559 = vlaneseq
    %v560 = vshrl.u32 %v559, 7
    %v561 = vsub.s32 5, %v560
    %v562 = vrot.slane %v538, %v561
    %v563 = vlaneseq
    %v564 = vshrl.u32 %v563, 7
    %v565 = vsub.s32 6, %v564
    %v566 = vrot.slane %v538, %v565
    %v567 = vlaneseq
    %v568 = vshrl.u32 %v567, 7
    %v569 = vsub.s32 7, %v568
    %v570 = vrot.slane %v538, %v569
    %v579 = vsub.f32 %v447, %v542
    %v580 = vsub.f32 %v450, %v546
    %v581 = vsub.f32 %v453, %v550
    %v582 = vsub.f32 %v456, %v554
    %v583 = vsub.f32 %v459, %v558
    %v584 = vsub.f32 %v462, %v562
    %v585 = vsub.f32 %v465, %v566
    %v586 = vsub.f32 %v468, %v570
    %v587 = vmul.f32 %v579, 1.442695
    %v588 = vpow.pop %v587
    %v589 = vmul.f32 %v580, 1.442695
    %v590 = vpow.pop %v589
    %v591 = vmul.f32 %v581, 1.442695
    %v592 = vpow.pop %v591
    %v593 = vmul.f32 %v582, 1.442695
    %v594 = vpow.pop %v593
    %v595 = vmul.f32 %v583, 1.442695
    %v596 = vpow.pop %v595
    %v597 = vmul.f32 %v584, 1.442695
    %v598 = vpow.pop %v597
    %v599 = vmul.f32 %v585, 1.442695
    %v600 = vpow.pop %v599
    %v601 = vmul.f32 %v586, 1.442695
    %v602 = vpow.pop %v601
    %v603 = vld [vmem:[#allocation3] sm:$0xff]
    %v604 = vmul.f32 %v534, %v603
    %613 = vset.pattern.permute.xlu0 0
    %614 = vperm.xlu0 %613, %v588
    %v615 = vpop.permute.xlu0 %614
    %616 = vset.pattern.permute.xlu0 0
    %617 = vperm.xlu0 %616, %v590
    %v618 = vpop.permute.xlu0 %617
    %619 = vset.pattern.permute.xlu0 0
    %620 = vperm.xlu0 %619, %v592
    %v621 = vpop.permute.xlu0 %620
    %622 = vset.pattern.permute.xlu0 0
    %623 = vperm.xlu0 %622, %v594
    %v624 = vpop.permute.xlu0 %623
    %625 = vset.pattern.permute.xlu0 0
    %626 = vperm.xlu0 %625, %v596
    %v627 = vpop.permute.xlu0 %626
    %628 = vset.pattern.permute.xlu0 0
    %629 = vperm.xlu0 %628, %v598
    %v630 = vpop.permute.xlu0 %629
    %631 = vset.pattern.permute.xlu0 0
    %632 = vperm.xlu0 %631, %v600
    %v633 = vpop.permute.xlu0 %632
    %634 = vset.pattern.permute.xlu0 0
    %635 = vperm.xlu0 %634, %v602
    %v636 = vpop.permute.xlu0 %635
    %v637 = vlaneseq
    %v638 = vshrl.u32 %v637, 7
    %v639 = vsub.s32 %v479, %v638
    %v640 = vrot.slane %v615, %v639
    %v641 = vlaneseq
    %v642 = vshrl.u32 %v641, 7
    %v643 = vsub.s32 %v479, %v642
    %v644 = vrot.slane %v618, %v643
    %v645 = vlaneseq
    %v646 = vshrl.u32 %v645, 7
    %v647 = vsub.s32 %v479, %v646
    %v648 = vrot.slane %v621, %v647
    %v649 = vlaneseq
    %v650 = vshrl.u32 %v649, 7
    %v651 = vsub.s32 %v479, %v650
    %v652 = vrot.slane %v624, %v651
    %v653 = vlaneseq
    %v654 = vshrl.u32 %v653, 7
    %v655 = vsub.s32 %v479, %v654
    %v656 = vrot.slane %v627, %v655
    %v657 = vlaneseq
    %v658 = vshrl.u32 %v657, 7
    %v659 = vsub.s32 %v479, %v658
    %v660 = vrot.slane %v630, %v659
    %v661 = vlaneseq
    %v662 = vshrl.u32 %v661, 7
    %v663 = vsub.s32 %v479, %v662
    %v664 = vrot.slane %v633, %v663
    %v665 = vlaneseq
    %v666 = vshrl.u32 %v665, 7
    %v667 = vsub.s32 %v479, %v666
    %v668 = vrot.slane %v636, %v667
    %v669 = vsel %vm512, %v644, %v640
    %v670 = vsel %vm514, %v648, %v669
    %v671 = vsel %vm516, %v652, %v670
    %v672 = vsel %vm518, %v656, %v671
    %v673 = vsel %vm520, %v660, %v672
    %v674 = vsel %vm522, %v664, %v673
    %v675 = vsel %vm524, %v668, %v674
    %v677 = vsel %vm527, %v675, 0.0
    %678 = vadd.xlane.f32.xlu0 %v677
    %v679 = vpop.xlane.xlu0 %678
    %v680 = vadd.f32 %v604, %v679
    %vm681 = vcmask 7168
    %682 = vst.msk [vmem:[#allocation3] sm:$0xff] %vm681, %v680
    %v683 = vsel %vm527, %v640, 0
    %685 = vmatprep.subr.mxu0 0.0
    %686 = vmatpush1.msra.mxu0 %v89
    %687 = vmatprep.subr.mxu0 0.0
    %688 = vmatpush1.msra.mxu0 0.0
    %689 = vmatprep.subr.mxu0 0.0
    %690 = vmatpush1.msra.mxu0 0.0
    %691 = vmatprep.subr.mxu0 0.0
    %692 = vmatpush1.msra.mxu0 0.0
    %693 = vmatprep.subr.mxu0 0.0
    %694 = vmatpush1.msra.mxu0 0.0
    %695 = vmatprep.subr.mxu0 0.0
    %696 = vmatpush1.msra.mxu0 0.0
    %697 = vmatprep.subr.mxu0 0.0
    %698 = vmatpush1.msra.mxu0 0.0
    %699 = vmatprep.subr.mxu0 0.0
    %700 = vmatpush1.msra.mxu0 0.0
    %701 = vmatprep.subr.mxu0 0.0
    %702 = vmatpush1.msra.mxu0 0.0
    %703 = vmatprep.subr.mxu0 0.0
    %704 = vmatpush1.msra.mxu0 0.0
    %705 = vmatprep.subr.mxu0 0.0
    %706 = vmatpush1.msra.mxu0 0.0
    %707 = vmatprep.subr.mxu0 0.0
    %708 = vmatpush1.msra.mxu0 0.0
    %709 = vmatprep.subr.mxu0 0.0
    %710 = vmatpush1.msra.mxu0 0.0
    %711 = vmatprep.subr.mxu0 0.0
    %712 = vmatpush1.msra.mxu0 0.0
    %713 = vmatprep.subr.mxu0 0.0
    %714 = vmatpush1.msra.mxu0 0.0
    %715 = vmatprep.subr.mxu0 0.0
    %716 = vmatpush1.msra.mxu0 0.0
    %717 = vmatprep.subr.mxu0 0.0
    %718 = vmatpush1.msra.mxu0 0.0
    %719 = vmatprep.subr.mxu0 0.0
    %720 = vmatpush1.msra.mxu0 0.0
    %721 = vmatprep.subr.mxu0 0.0
    %722 = vmatpush1.msra.mxu0 0.0
    %723 = vmatprep.subr.mxu0 0.0
    %724 = vmatpush1.msra.mxu0 0.0
    %725 = vmatprep.subr.mxu0 0.0
    %726 = vmatpush1.msra.mxu0 0.0
    %727 = vmatprep.subr.mxu0 0.0
    %728 = vmatpush1.msra.mxu0 0.0
    %729 = vmatprep.subr.mxu0 0.0
    %730 = vmatpush1.msra.mxu0 0.0
    %731 = vmatprep.subr.mxu0 0.0
    %732 = vmatpush1.msra.mxu0 0.0
    %733 = vmatprep.subr.mxu0 0.0
    %734 = vmatpush1.msra.mxu0 0.0
    %735 = vmatprep.subr.mxu0 0.0
    %736 = vmatpush1.msra.mxu0 0.0
    %737 = vmatprep.subr.mxu0 0.0
    %738 = vmatpush1.msra.mxu0 0.0
    %739 = vmatprep.subr.mxu0 0.0
    %740 = vmatpush1.msra.mxu0 0.0
    %741 = vmatprep.subr.mxu0 0.0
    %742 = vmatpush1.msra.mxu0 0.0
    %743 = vmatprep.subr.mxu0 0.0
    %744 = vmatpush1.msra.mxu0 0.0
    %745 = vmatprep.subr.mxu0 0.0
    %746 = vmatpush1.msra.mxu0 0.0
    %747 = vmatprep.subr.mxu0 0.0
    %748 = vmatpush1.msra.mxu0 0.0
    %749 = vmatprep.mubr.f32.mxu0 0.0
    %750 = vmatmul.mubr.f32.gmra.mrb[0].mxu0 %v683
    %v751 = vpop.f32.mrb[0].mxu0
    %v752 = vadd.f32 0.0, %v751
    %v753 = vpop.f32.mrb[0].mxu0
    %754 = vdwg.mxu0
    %v755 = vsel %vm527, %v644, 0
    %757 = vmatprep.subr.mxu0 0.0
    %758 = vmatpush1.msra.mxu0 %v90
    %759 = vmatprep.subr.mxu0 0.0
    %760 = vmatpush1.msra.mxu0 0.0
    %761 = vmatprep.subr.mxu0 0.0
    %762 = vmatpush1.msra.mxu0 0.0
    %763 = vmatprep.subr.mxu0 0.0
    %764 = vmatpush1.msra.mxu0 0.0
    %765 = vmatprep.subr.mxu0 0.0
    %766 = vmatpush1.msra.mxu0 0.0
    %767 = vmatprep.subr.mxu0 0.0
    %768 = vmatpush1.msra.mxu0 0.0
    %769 = vmatprep.subr.mxu0 0.0
    %770 = vmatpush1.msra.mxu0 0.0
    %771 = vmatprep.subr.mxu0 0.0
    %772 = vmatpush1.msra.mxu0 0.0
    %773 = vmatprep.subr.mxu0 0.0
    %774 = vmatpush1.msra.mxu0 0.0
    %775 = vmatprep.subr.mxu0 0.0
    %776 = vmatpush1.msra.mxu0 0.0
    %777 = vmatprep.subr.mxu0 0.0
    %778 = vmatpush1.msra.mxu0 0.0
    %779 = vmatprep.subr.mxu0 0.0
    %780 = vmatpush1.msra.mxu0 0.0
    %781 = vmatprep.subr.mxu0 0.0
    %782 = vmatpush1.msra.mxu0 0.0
    %783 = vmatprep.subr.mxu0 0.0
    %784 = vmatpush1.msra.mxu0 0.0
    %785 = vmatprep.subr.mxu0 0.0
    %786 = vmatpush1.msra.mxu0 0.0
    %787 = vmatprep.subr.mxu0 0.0
    %788 = vmatpush1.msra.mxu0 0.0
    %789 = vmatprep.subr.mxu0 0.0
    %790 = vmatpush1.msra.mxu0 0.0
    %791 = vmatprep.subr.mxu0 0.0
    %792 = vmatpush1.msra.mxu0 0.0
    %793 = vmatprep.subr.mxu0 0.0
    %794 = vmatpush1.msra.mxu0 0.0
    %795 = vmatprep.subr.mxu0 0.0
    %796 = vmatpush1.msra.mxu0 0.0
    %797 = vmatprep.subr.mxu0 0.0
    %798 = vmatpush1.msra.mxu0 0.0
    %799 = vmatprep.subr.mxu0 0.0
    %800 = vmatpush1.msra.mxu0 0.0
    %801 = vmatprep.subr.mxu0 0.0
    %802 = vmatpush1.msra.mxu0 0.0
    %803 = vmatprep.subr.mxu0 0.0
    %804 = vmatpush1.msra.mxu0 0.0
    %805 = vmatprep.subr.mxu0 0.0
    %806 = vmatpush1.msra.mxu0 0.0
    %807 = vmatprep.subr.mxu0 0.0
    %808 = vmatpush1.msra.mxu0 0.0
    %809 = vmatprep.subr.mxu0 0.0
    %810 = vmatpush1.msra.mxu0 0.0
    %811 = vmatprep.subr.mxu0 0.0
    %812 = vmatpush1.msra.mxu0 0.0
    %813 = vmatprep.subr.mxu0 0.0
    %814 = vmatpush1.msra.mxu0 0.0
    %815 = vmatprep.subr.mxu0 0.0
    %816 = vmatpush1.msra.mxu0 0.0
    %817 = vmatprep.subr.mxu0 0.0
    %818 = vmatpush1.msra.mxu0 0.0
    %819 = vmatprep.subr.mxu0 0.0
    %820 = vmatpush1.msra.mxu0 0.0
    %821 = vmatprep.mubr.f32.mxu0 0.0
    %822 = vmatmul.mubr.f32.gmra.mrb[0].mxu0 %v755
    %v823 = vpop.f32.mrb[0].mxu0
    %v824 = vadd.f32 0.0, %v823
    %v825 = vpop.f32.mrb[0].mxu0
    %826 = vdwg.mxu0
    %v827 = vsel %vm527, %v648, 0
    %829 = vmatprep.subr.mxu0 0.0
    %830 = vmatpush1.msra.mxu0 %v91
    %831 = vmatprep.subr.mxu0 0.0
    %832 = vmatpush1.msra.mxu0 0.0
    %833 = vmatprep.subr.mxu0 0.0
    %834 = vmatpush1.msra.mxu0 0.0
    %835 = vmatprep.subr.mxu0 0.0
    %836 = vmatpush1.msra.mxu0 0.0
    %837 = vmatprep.subr.mxu0 0.0
    %838 = vmatpush1.msra.mxu0 0.0
    %839 = vmatprep.subr.mxu0 0.0
    %840 = vmatpush1.msra.mxu0 0.0
    %841 = vmatprep.subr.mxu0 0.0
    %842 = vmatpush1.msra.mxu0 0.0
    %843 = vmatprep.subr.mxu0 0.0
    %844 = vmatpush1.msra.mxu0 0.0
    %845 = vmatprep.subr.mxu0 0.0
    %846 = vmatpush1.msra.mxu0 0.0
    %847 = vmatprep.subr.mxu0 0.0
    %848 = vmatpush1.msra.mxu0 0.0
    %849 = vmatprep.subr.mxu0 0.0
    %850 = vmatpush1.msra.mxu0 0.0
    %851 = vmatprep.subr.mxu0 0.0
    %852 = vmatpush1.msra.mxu0 0.0
    %853 = vmatprep.subr.mxu0 0.0
    %854 = vmatpush1.msra.mxu0 0.0
    %855 = vmatprep.subr.mxu0 0.0
    %856 = vmatpush1.msra.mxu0 0.0
    %857 = vmatprep.subr.mxu0 0.0
    %858 = vmatpush1.msra.mxu0 0.0
    %859 = vmatprep.subr.mxu0 0.0
    %860 = vmatpush1.msra.mxu0 0.0
    %861 = vmatprep.subr.mxu0 0.0
    %862 = vmatpush1.msra.mxu0 0.0
    %863 = vmatprep.subr.mxu0 0.0
    %864 = vmatpush1.msra.mxu0 0.0
    %865 = vmatprep.subr.mxu0 0.0
    %866 = vmatpush1.msra.mxu0 0.0
    %867 = vmatprep.subr.mxu0 0.0
    %868 = vmatpush1.msra.mxu0 0.0
    %869 = vmatprep.subr.mxu0 0.0
    %870 = vmatpush1.msra.mxu0 0.0
    %871 = vmatprep.subr.mxu0 0.0
    %872 = vmatpush1.msra.mxu0 0.0
    %873 = vmatprep.subr.mxu0 0.0
    %874 = vmatpush1.msra.mxu0 0.0
    %875 = vmatprep.subr.mxu0 0.0
    %876 = vmatpush1.msra.mxu0 0.0
    %877 = vmatprep.subr.mxu0 0.0
    %878 = vmatpush1.msra.mxu0 0.0
    %879 = vmatprep.subr.mxu0 0.0
    %880 = vmatpush1.msra.mxu0 0.0
    %881 = vmatprep.subr.mxu0 0.0
    %882 = vmatpush1.msra.mxu0 0.0
    %883 = vmatprep.subr.mxu0 0.0
    %884 = vmatpush1.msra.mxu0 0.0
    %885 = vmatprep.subr.mxu0 0.0
    %886 = vmatpush1.msra.mxu0 0.0
    %887 = vmatprep.subr.mxu0 0.0
    %888 = vmatpush1.msra.mxu0 0.0
    %889 = vmatprep.subr.mxu0 0.0
    %890 = vmatpush1.msra.mxu0 0.0
    %891 = vmatprep.subr.mxu0 0.0
    %892 = vmatpush1.msra.mxu0 0.0
    %893 = vmatprep.mubr.f32.mxu0 0.0
    %894 = vmatmul.mubr.f32.gmra.mrb[0].mxu0 %v827
    %v895 = vpop.f32.mrb[0].mxu0
    %v896 = vadd.f32 0.0, %v895
    %v897 = vpop.f32.mrb[0].mxu0
    %898 = vdwg.mxu0
    %v899 = vsel %vm527, %v652, 0
    %901 = vmatprep.subr.mxu0 0.0
    %902 = vmatpush1.msra.mxu0 %v92
    %903 = vmatprep.subr.mxu0 0.0
    %904 = vmatpush1.msra.mxu0 0.0
    %905 = vmatprep.subr.mxu0 0.0
    %906 = vmatpush1.msra.mxu0 0.0
    %907 = vmatprep.subr.mxu0 0.0
    %908 = vmatpush1.msra.mxu0 0.0
    %909 = vmatprep.subr.mxu0 0.0
    %910 = vmatpush1.msra.mxu0 0.0
    %911 = vmatprep.subr.mxu0 0.0
    %912 = vmatpush1.msra.mxu0 0.0
    %913 = vmatprep.subr.mxu0 0.0
    %914 = vmatpush1.msra.mxu0 0.0
    %915 = vmatprep.subr.mxu0 0.0
    %916 = vmatpush1.msra.mxu0 0.0
    %917 = vmatprep.subr.mxu0 0.0
    %918 = vmatpush1.msra.mxu0 0.0
    %919 = vmatprep.subr.mxu0 0.0
    %920 = vmatpush1.msra.mxu0 0.0
    %921 = vmatprep.subr.mxu0 0.0
    %922 = vmatpush1.msra.mxu0 0.0
    %923 = vmatprep.subr.mxu0 0.0
    %924 = vmatpush1.msra.mxu0 0.0
    %925 = vmatprep.subr.mxu0 0.0
    %926 = vmatpush1.msra.mxu0 0.0
    %927 = vmatprep.subr.mxu0 0.0
    %928 = vmatpush1.msra.mxu0 0.0
    %929 = vmatprep.subr.mxu0 0.0
    %930 = vmatpush1.msra.mxu0 0.0
    %931 = vmatprep.subr.mxu0 0.0
    %932 = vmatpush1.msra.mxu0 0.0
    %933 = vmatprep.subr.mxu0 0.0
    %934 = vmatpush1.msra.mxu0 0.0
    %935 = vmatprep.subr.mxu0 0.0
    %936 = vmatpush1.msra.mxu0 0.0
    %937 = vmatprep.subr.mxu0 0.0
    %938 = vmatpush1.msra.mxu0 0.0
    %939 = vmatprep.subr.mxu0 0.0
    %940 = vmatpush1.msra.mxu0 0.0
    %941 = vmatprep.subr.mxu0 0.0
    %942 = vmatpush1.msra.mxu0 0.0
    %943 = vmatprep.subr.mxu0 0.0
    %944 = vmatpush1.msra.mxu0 0.0
    %945 = vmatprep.subr.mxu0 0.0
    %946 = vmatpush1.msra.mxu0 0.0
    %947 = vmatprep.subr.mxu0 0.0
    %948 = vmatpush1.msra.mxu0 0.0
    %949 = vmatprep.subr.mxu0 0.0
    %950 = vmatpush1.msra.mxu0 0.0
    %951 = vmatprep.subr.mxu0 0.0
    %952 = vmatpush1.msra.mxu0 0.0
    %953 = vmatprep.subr.mxu0 0.0
    %954 = vmatpush1.msra.mxu0 0.0
    %955 = vmatprep.subr.mxu0 0.0
    %956 = vmatpush1.msra.mxu0 0.0
    %957 = vmatprep.subr.mxu0 0.0
    %958 = vmatpush1.msra.mxu0 0.0
    %959 = vmatprep.subr.mxu0 0.0
    %960 = vmatpush1.msra.mxu0 0.0
    %961 = vmatprep.subr.mxu0 0.0
    %962 = vmatpush1.msra.mxu0 0.0
    %963 = vmatprep.subr.mxu0 0.0
    %964 = vmatpush1.msra.mxu0 0.0
    %965 = vmatprep.mubr.f32.mxu0 0.0
    %966 = vmatmul.mubr.f32.gmra.mrb[0].mxu0 %v899
    %v967 = vpop.f32.mrb[0].mxu0
    %v968 = vadd.f32 0.0, %v967
    %v969 = vpop.f32.mrb[0].mxu0
    %970 = vdwg.mxu0
    %v971 = vsel %vm527, %v656, 0
    %973 = vmatprep.subr.mxu0 0.0
    %974 = vmatpush1.msra.mxu0 %v93
    %975 = vmatprep.subr.mxu0 0.0
    %976 = vmatpush1.msra.mxu0 0.0
    %977 = vmatprep.subr.mxu0 0.0
    %978 = vmatpush1.msra.mxu0 0.0
    %979 = vmatprep.subr.mxu0 0.0
    %980 = vmatpush1.msra.mxu0 0.0
    %981 = vmatprep.subr.mxu0 0.0
    %982 = vmatpush1.msra.mxu0 0.0
    %983 = vmatprep.subr.mxu0 0.0
    %984 = vmatpush1.msra.mxu0 0.0
    %985 = vmatprep.subr.mxu0 0.0
    %986 = vmatpush1.msra.mxu0 0.0
    %987 = vmatprep.subr.mxu0 0.0
    %988 = vmatpush1.msra.mxu0 0.0
    %989 = vmatprep.subr.mxu0 0.0
    %990 = vmatpush1.msra.mxu0 0.0
    %991 = vmatprep.subr.mxu0 0.0
    %992 = vmatpush1.msra.mxu0 0.0
    %993 = vmatprep.subr.mxu0 0.0
    %994 = vmatpush1.msra.mxu0 0.0
    %995 = vmatprep.subr.mxu0 0.0
    %996 = vmatpush1.msra.mxu0 0.0
    %997 = vmatprep.subr.mxu0 0.0
    %998 = vmatpush1.msra.mxu0 0.0
    %999 = vmatprep.subr.mxu0 0.0
    %1000 = vmatpush1.msra.mxu0 0.0
    %1001 = vmatprep.subr.mxu0 0.0
    %1002 = vmatpush1.msra.mxu0 0.0
    %1003 = vmatprep.subr.mxu0 0.0
    %1004 = vmatpush1.msra.mxu0 0.0
    %1005 = vmatprep.subr.mxu0 0.0
    %1006 = vmatpush1.msra.mxu0 0.0
    %1007 = vmatprep.subr.mxu0 0.0
    %1008 = vmatpush1.msra.mxu0 0.0
    %1009 = vmatprep.subr.mxu0 0.0
    %1010 = vmatpush1.msra.mxu0 0.0
    %1011 = vmatprep.subr.mxu0 0.0
    %1012 = vmatpush1.msra.mxu0 0.0
    %1013 = vmatprep.subr.mxu0 0.0
    %1014 = vmatpush1.msra.mxu0 0.0
    %1015 = vmatprep.subr.mxu0 0.0
    %1016 = vmatpush1.msra.mxu0 0.0
    %1017 = vmatprep.subr.mxu0 0.0
    %1018 = vmatpush1.msra.mxu0 0.0
    %1019 = vmatprep.subr.mxu0 0.0
    %1020 = vmatpush1.msra.mxu0 0.0
    %1021 = vmatprep.subr.mxu0 0.0
    %1022 = vmatpush1.msra.mxu0 0.0
    %1023 = vmatprep.subr.mxu0 0.0
    %1024 = vmatpush1.msra.mxu0 0.0
    %1025 = vmatprep.subr.mxu0 0.0
    %1026 = vmatpush1.msra.mxu0 0.0
    %1027 = vmatprep.subr.mxu0 0.0
    %1028 = vmatpush1.msra.mxu0 0.0
    %1029 = vmatprep.subr.mxu0 0.0
    %1030 = vmatpush1.msra.mxu0 0.0
    %1031 = vmatprep.subr.mxu0 0.0
    %1032 = vmatpush1.msra.mxu0 0.0
    %1033 = vmatprep.subr.mxu0 0.0
    %1034 = vmatpush1.msra.mxu0 0.0
    %1035 = vmatprep.subr.mxu0 0.0
    %1036 = vmatpush1.msra.mxu0 0.0
    %1037 = vmatprep.mubr.f32.mxu0 0.0
    %1038 = vmatmul.mubr.f32.gmra.mrb[0].mxu0 %v971
    %v1039 = vpop.f32.mrb[0].mxu0
    %v1040 = vadd.f32 0.0, %v1039
    %v1041 = vpop.f32.mrb[0].mxu0
    %1042 = vdwg.mxu0
    %v1043 = vsel %vm527, %v660, 0
    %1045 = vmatprep.subr.mxu0 0.0
    %1046 = vmatpush1.msra.mxu0 %v94
    %1047 = vmatprep.subr.mxu0 0.0
    %1048 = vmatpush1.msra.mxu0 0.0
    %1049 = vmatprep.subr.mxu0 0.0
    %1050 = vmatpush1.msra.mxu0 0.0
    %1051 = vmatprep.subr.mxu0 0.0
    %1052 = vmatpush1.msra.mxu0 0.0
    %1053 = vmatprep.subr.mxu0 0.0
    %1054 = vmatpush1.msra.mxu0 0.0
    %1055 = vmatprep.subr.mxu0 0.0
    %1056 = vmatpush1.msra.mxu0 0.0
    %1057 = vmatprep.subr.mxu0 0.0
    %1058 = vmatpush1.msra.mxu0 0.0
    %1059 = vmatprep.subr.mxu0 0.0
    %1060 = vmatpush1.msra.mxu0 0.0
    %1061 = vmatprep.subr.mxu0 0.0
    %1062 = vmatpush1.msra.mxu0 0.0
    %1063 = vmatprep.subr.mxu0 0.0
    %1064 = vmatpush1.msra.mxu0 0.0
    %1065 = vmatprep.subr.mxu0 0.0
    %1066 = vmatpush1.msra.mxu0 0.0
    %1067 = vmatprep.subr.mxu0 0.0
    %1068 = vmatpush1.msra.mxu0 0.0
    %1069 = vmatprep.subr.mxu0 0.0
    %1070 = vmatpush1.msra.mxu0 0.0
    %1071 = vmatprep.subr.mxu0 0.0
    %1072 = vmatpush1.msra.mxu0 0.0
    %1073 = vmatprep.subr.mxu0 0.0
    %1074 = vmatpush1.msra.mxu0 0.0
    %1075 = vmatprep.subr.mxu0 0.0
    %1076 = vmatpush1.msra.mxu0 0.0
    %1077 = vmatprep.subr.mxu0 0.0
    %1078 = vmatpush1.msra.mxu0 0.0
    %1079 = vmatprep.subr.mxu0 0.0
    %1080 = vmatpush1.msra.mxu0 0.0
    %1081 = vmatprep.subr.mxu0 0.0
    %1082 = vmatpush1.msra.mxu0 0.0
    %1083 = vmatprep.subr.mxu0 0.0
    %1084 = vmatpush1.msra.mxu0 0.0
    %1085 = vmatprep.subr.mxu0 0.0
    %1086 = vmatpush1.msra.mxu0 0.0
    %1087 = vmatprep.subr.mxu0 0.0
    %1088 = vmatpush1.msra.mxu0 0.0
    %1089 = vmatprep.subr.mxu0 0.0
    %1090 = vmatpush1.msra.mxu0 0.0
    %1091 = vmatprep.subr.mxu0 0.0
    %1092 = vmatpush1.msra.mxu0 0.0
    %1093 = vmatprep.subr.mxu0 0.0
    %1094 = vmatpush1.msra.mxu0 0.0
    %1095 = vmatprep.subr.mxu0 0.0
    %1096 = vmatpush1.msra.mxu0 0.0
    %1097 = vmatprep.subr.mxu0 0.0
    %1098 = vmatpush1.msra.mxu0 0.0
    %1099 = vmatprep.subr.mxu0 0.0
    %1100 = vmatpush1.msra.mxu0 0.0
    %1101 = vmatprep.subr.mxu0 0.0
    %1102 = vmatpush1.msra.mxu0 0.0
    %1103 = vmatprep.subr.mxu0 0.0
    %1104 = vmatpush1.msra.mxu0 0.0
    %1105 = vmatprep.subr.mxu0 0.0
    %1106 = vmatpush1.msra.mxu0 0.0
    %1107 = vmatprep.subr.mxu0 0.0
    %1108 = vmatpush1.msra.mxu0 0.0
    %1109 = vmatprep.mubr.f32.mxu0 0.0
    %1110 = vmatmul.mubr.f32.gmra.mrb[0].mxu0 %v1043
    %v1111 = vpop.f32.mrb[0].mxu0
    %v1112 = vadd.f32 0.0, %v1111
    %v1113 = vpop.f32.mrb[0].mxu0
    %1114 = vdwg.mxu0
    %v1115 = vsel %vm527, %v664, 0
    %1117 = vmatprep.subr.mxu0 0.0
    %1118 = vmatpush1.msra.mxu0 %v95
    %1119 = vmatprep.subr.mxu0 0.0
    %1120 = vmatpush1.msra.mxu0 0.0
    %1121 = vmatprep.subr.mxu0 0.0
    %1122 = vmatpush1.msra.mxu0 0.0
    %1123 = vmatprep.subr.mxu0 0.0
    %1124 = vmatpush1.msra.mxu0 0.0
    %1125 = vmatprep.subr.mxu0 0.0
    %1126 = vmatpush1.msra.mxu0 0.0
    %1127 = vmatprep.subr.mxu0 0.0
    %1128 = vmatpush1.msra.mxu0 0.0
    %1129 = vmatprep.subr.mxu0 0.0
    %1130 = vmatpush1.msra.mxu0 0.0
    %1131 = vmatprep.subr.mxu0 0.0
    %1132 = vmatpush1.msra.mxu0 0.0
    %1133 = vmatprep.subr.mxu0 0.0
    %1134 = vmatpush1.msra.mxu0 0.0
    %1135 = vmatprep.subr.mxu0 0.0
    %1136 = vmatpush1.msra.mxu0 0.0
    %1137 = vmatprep.subr.mxu0 0.0
    %1138 = vmatpush1.msra.mxu0 0.0
    %1139 = vmatprep.subr.mxu0 0.0
    %1140 = vmatpush1.msra.mxu0 0.0
    %1141 = vmatprep.subr.mxu0 0.0
    %1142 = vmatpush1.msra.mxu0 0.0
    %1143 = vmatprep.subr.mxu0 0.0
    %1144 = vmatpush1.msra.mxu0 0.0
    %1145 = vmatprep.subr.mxu0 0.0
    %1146 = vmatpush1.msra.mxu0 0.0
    %1147 = vmatprep.subr.mxu0 0.0
    %1148 = vmatpush1.msra.mxu0 0.0
    %1149 = vmatprep.subr.mxu0 0.0
    %1150 = vmatpush1.msra.mxu0 0.0
    %1151 = vmatprep.subr.mxu0 0.0
    %1152 = vmatpush1.msra.mxu0 0.0
    %1153 = vmatprep.subr.mxu0 0.0
    %1154 = vmatpush1.msra.mxu0 0.0
    %1155 = vmatprep.subr.mxu0 0.0
    %1156 = vmatpush1.msra.mxu0 0.0
    %1157 = vmatprep.subr.mxu0 0.0
    %1158 = vmatpush1.msra.mxu0 0.0
    %1159 = vmatprep.subr.mxu0 0.0
    %1160 = vmatpush1.msra.mxu0 0.0
    %1161 = vmatprep.subr.mxu0 0.0
    %1162 = vmatpush1.msra.mxu0 0.0
    %1163 = vmatprep.subr.mxu0 0.0
    %1164 = vmatpush1.msra.mxu0 0.0
    %1165 = vmatprep.subr.mxu0 0.0
    %1166 = vmatpush1.msra.mxu0 0.0
    %1167 = vmatprep.subr.mxu0 0.0
    %1168 = vmatpush1.msra.mxu0 0.0
    %1169 = vmatprep.subr.mxu0 0.0
    %1170 = vmatpush1.msra.mxu0 0.0
    %1171 = vmatprep.subr.mxu0 0.0
    %1172 = vmatpush1.msra.mxu0 0.0
    %1173 = vmatprep.subr.mxu0 0.0
    %1174 = vmatpush1.msra.mxu0 0.0
    %1175 = vmatprep.subr.mxu0 0.0
    %1176 = vmatpush1.msra.mxu0 0.0
    %1177 = vmatprep.subr.mxu0 0.0
    %1178 = vmatpush1.msra.mxu0 0.0
    %1179 = vmatprep.subr.mxu0 0.0
    %1180 = vmatpush1.msra.mxu0 0.0
    %1181 = vmatprep.mubr.f32.mxu0 0.0
    %1182 = vmatmul.mubr.f32.gmra.mrb[0].mxu0 %v1115
    %v1183 = vpop.f32.mrb[0].mxu0
    %v1184 = vadd.f32 0.0, %v1183
    %v1185 = vpop.f32.mrb[0].mxu0
    %1186 = vdwg.mxu0
    %v1187 = vsel %vm527, %v668, 0
    %1189 = vmatprep.subr.mxu0 0.0
    %1190 = vmatpush1.msra.mxu0 %v96
    %1191 = vmatprep.subr.mxu0 0.0
    %1192 = vmatpush1.msra.mxu0 0.0
    %1193 = vmatprep.subr.mxu0 0.0
    %1194 = vmatpush1.msra.mxu0 0.0
    %1195 = vmatprep.subr.mxu0 0.0
    %1196 = vmatpush1.msra.mxu0 0.0
    %1197 = vmatprep.subr.mxu0 0.0
    %1198 = vmatpush1.msra.mxu0 0.0
    %1199 = vmatprep.subr.mxu0 0.0
    %1200 = vmatpush1.msra.mxu0 0.0
    %1201 = vmatprep.subr.mxu0 0.0
    %1202 = vmatpush1.msra.mxu0 0.0
    %1203 = vmatprep.subr.mxu0 0.0
    %1204 = vmatpush1.msra.mxu0 0.0
    %1205 = vmatprep.subr.mxu0 0.0
    %1206 = vmatpush1.msra.mxu0 0.0
    %1207 = vmatprep.subr.mxu0 0.0
    %1208 = vmatpush1.msra.mxu0 0.0
    %1209 = vmatprep.subr.mxu0 0.0
    %1210 = vmatpush1.msra.mxu0 0.0
    %1211 = vmatprep.subr.mxu0 0.0
    %1212 = vmatpush1.msra.mxu0 0.0
    %1213 = vmatprep.subr.mxu0 0.0
    %1214 = vmatpush1.msra.mxu0 0.0
    %1215 = vmatprep.subr.mxu0 0.0
    %1216 = vmatpush1.msra.mxu0 0.0
    %1217 = vmatprep.subr.mxu0 0.0
    %1218 = vmatpush1.msra.mxu0 0.0
    %1219 = vmatprep.subr.mxu0 0.0
    %1220 = vmatpush1.msra.mxu0 0.0
    %1221 = vmatprep.subr.mxu0 0.0
    %1222 = vmatpush1.msra.mxu0 0.0
    %1223 = vmatprep.subr.mxu0 0.0
    %1224 = vmatpush1.msra.mxu0 0.0
    %1225 = vmatprep.subr.mxu0 0.0
    %1226 = vmatpush1.msra.mxu0 0.0
    %1227 = vmatprep.subr.mxu0 0.0
    %1228 = vmatpush1.msra.mxu0 0.0
    %1229 = vmatprep.subr.mxu0 0.0
    %1230 = vmatpush1.msra.mxu0 0.0
    %1231 = vmatprep.subr.mxu0 0.0
    %1232 = vmatpush1.msra.mxu0 0.0
    %1233 = vmatprep.subr.mxu0 0.0
    %1234 = vmatpush1.msra.mxu0 0.0
    %1235 = vmatprep.subr.mxu0 0.0
    %1236 = vmatpush1.msra.mxu0 0.0
    %1237 = vmatprep.subr.mxu0 0.0
    %1238 = vmatpush1.msra.mxu0 0.0
    %1239 = vmatprep.subr.mxu0 0.0
    %1240 = vmatpush1.msra.mxu0 0.0
    %1241 = vmatprep.subr.mxu0 0.0
    %1242 = vmatpush1.msra.mxu0 0.0
    %1243 = vmatprep.subr.mxu0 0.0
    %1244 = vmatpush1.msra.mxu0 0.0
    %1245 = vmatprep.subr.mxu0 0.0
    %1246 = vmatpush1.msra.mxu0 0.0
    %1247 = vmatprep.subr.mxu0 0.0
    %1248 = vmatpush1.msra.mxu0 0.0
    %1249 = vmatprep.subr.mxu0 0.0
    %1250 = vmatpush1.msra.mxu0 0.0
    %1251 = vmatprep.subr.mxu0 0.0
    %1252 = vmatpush1.msra.mxu0 0.0
    %1253 = vmatprep.mubr.f32.mxu0 0.0
    %1254 = vmatmul.mubr.f32.gmra.mrb[0].mxu0 %v1187
    %v1255 = vpop.f32.mrb[0].mxu0
    %v1256 = vadd.f32 0.0, %v1255
    %v1257 = vpop.f32.mrb[0].mxu0
    %1258 = vdwg.mxu0
    %v1259 = vld [vmem:[#allocation4] sm:$0xff]
    %1261 = vset.pattern.permute.xlu0 0
    %1262 = vperm.xlu0 %1261, %v534
    %v1263 = vpop.permute.xlu0 %1262
    %v1265 = vmul.f32 %v1263, %v1259
    %v1274 = vrot.slane %v824, 7
    %v1275 = vsel %vm512, %v1274, %v752
    %v1276 = vrot.slane %v896, 6
    %v1277 = vsel %vm514, %v1276, %v1275
    %v1278 = vrot.slane %v968, 5
    %v1279 = vsel %vm516, %v1278, %v1277
    %v1280 = vrot.slane %v1040, 4
    %v1281 = vsel %vm518, %v1280, %v1279
    %v1282 = vrot.slane %v1112, 3
    %v1283 = vsel %vm520, %v1282, %v1281
    %v1284 = vrot.slane %v1184, 2
    %v1285 = vsel %vm522, %v1284, %v1283
    %v1286 = vrot.slane %v1256, 1
    %v1287 = vsel %vm524, %v1286, %v1285
    %v1289 = vadd.f32 %v1265, %v1287
    %1290 = vst.msk [vmem:[#allocation4] sm:$0xff] %vm102, %v1289
    %1291 = vst.msk [vmem:[#allocation2] sm:$0xff] %vm681, %v531
    %s1292 = smul.u32 0, 8
    %s1293 = scalar_lea.vmem [#allocation5], %s1292
    %1294 = vst.msk [vmem:[%s1293] sm:$0xff] %vm527, %v525
    // Predicated region
    $region46: #{tpu_custom_call.1} parent=1 // pred_check
      %p1295 = pneg %p80
    $region47: #{tpu_custom_call.1} parent=1 // pred_check_branch
      %1297 = sbr.rel (%p1295) target = $region49
    $region48: #{tpu_custom_call.1} parent=1 // pred_region
      %v1298 = vld [vmem:[#allocation3] sm:$0xff]
      %v1299 = vrcp.pop %v1298
      %v1300 = vmul.f32 1.0, %v1299
      %v1301 = vld [vmem:[#allocation2] sm:$0xff]
      %v1302 = vld [vmem:[#allocation4] sm:$0xff]
      %1304 = vset.pattern.permute.xlu0 0
      %1305 = vperm.xlu0 %1304, %v1300
      %v1306 = vpop.permute.xlu0 %1305
      %v1308 = vmul.f32 %v1302, %v1306
      %1309 = vst.msk [vmem:[#allocation14] sm:$0xff] %vm102, %v1308
      %v1310 = vld [vmem:[#allocation5] sm:$0xff]
      %1312 = vset.pattern.permute.xlu0 0
      %1313 = vperm.xlu0 %1312, %v1301
      %v1314 = vpop.permute.xlu0 %1313
      %v1316 = vsub.f32 %v1310, %v1314
      %v1317 = vmul.f32 %v1316, 1.442695
      %v1318 = vpow.pop %v1317
      %v1319 = vmul.f32 %v1318, %v1306
      %1320 = vst.msk [vmem:[#allocation15] sm:$0xff] %vm527, %v1319
    $region49: #{tpu_custom_call.1} parent=1 // pred_fallthru
      _
    // Predicated region
    $region50: #{tpu_custom_call.1} parent=1 // pred_check
      _
    $region51: #{tpu_custom_call.1} parent=1 // pred_check_branch
      %1322 = sbr.rel (0) target = $region53
    $region52: #{tpu_custom_call.1} parent=1 // pred_region
      %s1324 = ssub.s32 128, 128
      %1325 = vsyncadd [#allocation8], %s1324
      %s1327 = sshll.u32 [#allocation14], 4
      %s1328 = int_to_ptr.vmem [resolvable:$true] %s1327
      %1330 = dma.vmem_to_hbm [thread:$0]  %s1328, 128, %s6, [#allocation8]
    $region53: #{tpu_custom_call.1} parent=1 // pred_fallthru
      _
    // Predicated region
    $region54: #{tpu_custom_call.1} parent=1 // pred_check
      _
    $region55: #{tpu_custom_call.1} parent=1 // pred_check_branch
      %1332 = sbr.rel (0) target = $region57
    $region56: #{tpu_custom_call.1} parent=1 // pred_region
      %s1334 = ssub.s32 128, 128
      %1335 = vsyncadd [#allocation16], %s1334
      %s1337 = sshll.u32 [#allocation15], 4
      %s1338 = int_to_ptr.vmem [resolvable:$true] %s1337
      %1340 = dma.vmem_to_hbm [thread:$0]  %s1338, 128, %s7, [#allocation16]
    $region57: #{tpu_custom_call.1} parent=1 // pred_fallthru
      _
    // Predicated region
    $region58: #{tpu_custom_call.1} parent=1 // pred_check
      _
    $region59: #{tpu_custom_call.1} parent=1 // pred_check_branch
      %1342 = sbr.rel (0) target = $region61
    $region60: #{tpu_custom_call.1} parent=1 // pred_region
      %1343 = dma.done [#allocation8], 128
    $region61: #{tpu_custom_call.1} parent=1 // pred_fallthru
      _
    // Predicated region
    $region62: #{tpu_custom_call.1} parent=1 // pred_check
      _
    $region63: #{tpu_custom_call.1} parent=1 // pred_check_branch
      %1345 = sbr.rel (0) target = $region65
    $region64: #{tpu_custom_call.1} parent=1 // pred_region
      %1346 = dma.done [#allocation16], 128
    $region65: #{tpu_custom_call.1} parent=1 // pred_fallthru
      _
    %1347 = vsyncpa [#allocation7], 1
    %1348 = vsyncpa [#allocation10], 1
    %1349 = vsyncpa [#allocation13], 1
    %1350 = vsyncpa [#allocation8], 1
    %1351 = vsyncpa [#allocation16], 1

</llo_original>
